<compile_context>
chip_gen: v6e
topology: v6e:2x2x1
jax: 0.10.0
libtpu: 0.0.40
codegen_flags: <defaults>
</compile_context>

<pallas_src>
import math
import numpy as np

import jax
import jax.numpy as jnp
from jax.experimental import pallas as pl
from jax.experimental.pallas import tpu as pltpu

FALSE_WEIGHT = 10.0
EPS = 1e-6
CENTER_VALUE = 2
SIGMA_D, SIGMA_HW = 1.0, 8.0
N_STATS = 9
STATS_ROWS = 16           # sublane-aligned stats block (full (16,128) accumulate)
TILE_VR_MAX = 2048        # voxel rows (of 128 lanes) per stats grid step


def _round_up(x, m):
    return ((x + m - 1) // m) * m


def _mosaic_params(dimension_semantics, est_vmem_bytes):
    """CompilerParams; raise the scoped-VMEM limit only when the estimate needs it."""
    kwargs = dict(dimension_semantics=dimension_semantics)
    if est_vmem_bytes > 12 * 1024 * 1024:      # below v5e's ~16 MiB default limit
        kwargs["vmem_limit_bytes"] = int(min(est_vmem_bytes + (32 << 20), 100 << 20))
    return pltpu.CompilerParams(**kwargs)


# ---------------------------------------------------------------------------
# Separable 1-D Gaussian + exact down / (nearest-up + smooth) operator matrices
# ---------------------------------------------------------------------------
def _gauss1d(size, sigma):
    x = np.arange(size, dtype=np.float64)
    mean = (size - 1) / 2.0
    g = np.exp(-(((x - mean) / sigma) ** 2) / 2.0) / (sigma * math.sqrt(2.0 * math.pi))
    return g / g.sum()          # product of per-axis normalized kernels == 3D kernel


def _down_matrix(n, k, stride, pad):
    """Right-multiply matrix (n, n_out) of the zero-padded strided 1-D conv."""
    kk = len(k)
    n_out = (n + 2 * pad - kk) // stride + 1
    m = np.zeros((n, n_out), np.float64)
    for j in range(n_out):
        for t in range(kk):
            q = stride * j + t - pad
            if 0 <= q < n:
                m[q, j] += k[t]
    return m, n_out


def _upsmooth_matrix(n_in, n_out, k, pad):
    """Right-multiply matrix (n_in, n_out): nearest upsample then stride-1 conv."""
    kk = len(k)
    r = np.zeros((n_in, n_out), np.float64)
    for p in range(n_out):
        r[(p * n_in) // n_out, p] = 1.0        # torch 'nearest' index map
    s = np.zeros((n_out, n_out), np.float64)
    for p in range(n_out):
        for t in range(kk):
            q = p + t - pad
            if 0 <= q < n_out:
                s[q, p] += k[t]
    return r @ s


# ---------------------------------------------------------------------------
# Kernel A: masked NLL / center-Dice statistics, tiled over the voxel axis.
# Output (B, nsplit, 16, 128): rows 0..8 hold per-lane partial sums; the cheap
# final cross-lane / cross-split reduce is done in the wrapper.
# ---------------------------------------------------------------------------
def _make_stats_kernel(C):
    def stats_kernel(pred_ref, tgt_ref, out_ref):
        k = pl.program_id(2)

        @pl.when(k == 0)
        def _():
            out_ref[...] = jnp.zeros_like(out_ref)

        p = pred_ref[0].astype(jnp.float32)          # (C, TVR, 128) log-probs
        t = tgt_ref[0].astype(jnp.int32)             # (TVR, 128) labels in [-1, 5]

        validf = (t >= 0).astype(jnp.float32)
        hm = t > 2                                   # labels 3,4,5
        heavyf = hm.astype(jnp.float32)
        lightf = validf - heavyf                     # labels 0,1,2
        cls = jnp.where(hm, t - 3, t)                # fmod(t,3) for heavy; -1 stays -1

        nll_vox = jnp.zeros_like(p[0])
        for c in range(C):
            nll_vox = nll_vox - jnp.where(cls == c, p[c], 0.0)

        cp = jnp.exp(p[C - 1])                       # center-channel probability
        cm = (cls == CENTER_VALUE).astype(jnp.float32)
        ctl = cm * lightf                            # center target & light
        cth = cm * heavyf                            # center target & heavy
        w = lightf + FALSE_WEIGHT * heavyf           # fused True/False NLL weight
        cp2 = cp * cp

        zero = jnp.zeros((128,), jnp.float32)
        rows = [
            jnp.sum(lightf, axis=0),                 # 0 light_cnt
            jnp.sum(heavyf, axis=0),                 # 1 heavy_cnt
            jnp.sum(w * nll_vox, axis=0),            # 2 weighted NLL sum
            jnp.sum(cp * ctl, axis=0),               # 3 intersection (light)
            jnp.sum(lightf * cp2, axis=0),           # 4 pred^2 (light)
            jnp.sum(ctl, axis=0),                    # 5 target^2 / has-2 count
            jnp.sum(cp * cth, axis=0),               # 6 intersection (heavy)
            jnp.sum(heavyf * cp2, axis=0),           # 7 pred^2 (heavy)
            jnp.sum(cth, axis=0),                    # 8 target^2 / has-5 count
        ] + [zero] * (STATS_ROWS - N_STATS)
        # unmasked full-block accumulate (rows padded to the (16,128) tile)
        out_ref[0, 0, :, :] += jnp.stack(rows, axis=0)

    return stats_kernel


def _stats_call(pred_r, tgt_i8, tile_vr, nsplit, nk):
    B, C, _, _ = pred_r.shape
    est = 2 * (C * 4 + 1) * tile_vr * 128            # dbl-buffered pred(f32)+tgt(i8)
    return pl.pallas_call(
        _make_stats_kernel(C),
        out_shape=jax.ShapeDtypeStruct((B, nsplit, STATS_ROWS, 128), jnp.float32),
        grid=(B, nsplit, nk),
        in_specs=[
            pl.BlockSpec((1, C, tile_vr, 128), lambda b, j, k: (b, 0, j * nk + k, 0)),
            pl.BlockSpec((1, tile_vr, 128), lambda b, j, k: (b, j * nk + k, 0)),
        ],
        out_specs=pl.BlockSpec((1, 1, STATS_ROWS, 128), lambda b, j, k: (b, j, 0, 0)),
        compiler_params=_mosaic_params(("parallel", "parallel", "arbitrary"), est),
    )(pred_r, tgt_i8)


# ---------------------------------------------------------------------------
# Kernel B: fused smooth-loss path, one batch item per grid step, all in VMEM.
#   |exp(p_c) - upsmooth(nearest_up(downsample(exp(p_c))))|.mean()
# All three axis operators are exact and separable; W and H use folded
# (down -> nearest-up -> smooth) full-resolution operator matrices on the MXU,
# D uses parity-split shifted adds on the leading dim.
# ---------------------------------------------------------------------------
def _make_smooth_kernel(D, H, W):
    kd = _gauss1d(3, SIGMA_D)
    a0, a1, a2 = float(kd[0]), float(kd[1]), float(kd[2])
    Dh = D // 2
    inv_vol = 1.0 / float(D * H * W)

    def smooth_kernel(pred_ref, mw_ref, mh_ref, out_ref):
        p = pred_ref[0, 0].astype(jnp.float32)       # (D, H, W) center log-probs
        pr = p.reshape(Dh, 2, H, W)
        x_even = jnp.exp(pr[:, 0])                   # planes 0,2,4,...
        x_odd = jnp.exp(pr[:, 1])                    # planes 1,3,5,...

        # ---- D axis: stride-2 3-tap Gaussian (zero pad 1) ---------------------
        #   y[q] = a0*x[2q-1] + a1*x[2q] + a2*x[2q+1]
        t1 = jnp.concatenate(
            [a1 * x_even[:1] + a2 * x_odd[:1],
             a0 * x_odd[:Dh - 1] + a1 * x_even[1:] + a2 * x_odd[1:]],
            axis=0)                                  # (Dh, H, W)

        # ---- W axis: folded down+nearest-up+smooth as ONE (W,W) matmul (MXU) --
        t2 = jnp.dot(t1.reshape(Dh * H, W), mw_ref[...],
                     preferred_element_type=jnp.float32).reshape(Dh, H, W)

        # ---- H axis: same folded operator; put H on the lane axis, ONE matmul -
        t2t = jnp.swapaxes(t2, 1, 2)                 # (Dh, W, H)
        t3 = jnp.dot(t2t.reshape(Dh * W, H), mh_ref[...],
                     preferred_element_type=jnp.float32).reshape(Dh, W, H)
        t4 = jnp.swapaxes(t3, 1, 2)                  # (Dh, H, W)

        # ---- D axis: nearest-up + stride-1 3-tap smooth, kept parity-split ----
        #   even planes: ev[q] = a0*t4[q-1] + (a1+a2)*t4[q]   (t4[-1] = 0)
        #   odd  planes: od[q] = (a0+a1)*t4[q] + a2*t4[q+1]   (t4[Dh] = 0)
        w_e, w_o = a1 + a2, a0 + a1
        acc = jnp.sum(jnp.abs(x_even[:1] - w_e * t4[:1]))
        acc += jnp.sum(jnp.abs(x_even[1:] - (w_e * t4[1:] + a0 * t4[:Dh - 1])))
        acc += jnp.sum(jnp.abs(x_odd[:Dh - 1] - (w_o * t4[:Dh - 1] + a2 * t4[1:])))
        acc += jnp.sum(jnp.abs(x_odd[Dh - 1:] - w_o * t4[Dh - 1:]))

        out_ref[0] = jnp.zeros((8, 128), jnp.float32) + acc * inv_vol

    return smooth_kernel


def _smooth_call(prediction, mw, mh):
    B, C, D, H, W = prediction.shape
    est = 5 * D * H * W * 4                          # input dbl-buf + parity-split temps
    # TODO(synk): add a D-tiled (halo) path for volumes that exceed v7x's 64 MiB VMEM.
    return pl.pallas_call(
        _make_smooth_kernel(D, H, W),
        out_shape=jax.ShapeDtypeStruct((B, 8, 128), jnp.float32),
        grid=(B,),
        in_specs=[pl.BlockSpec((1, 1, D, H, W), lambda b: (b, C - 1, 0, 0, 0)),
                  pl.BlockSpec((W, W), lambda b: (0, 0)),
                  pl.BlockSpec((H, H), lambda b: (0, 0))],
        out_specs=pl.BlockSpec((1, 8, 128), lambda b: (b, 0, 0)),
        compiler_params=_mosaic_params(("parallel",), est),
    )(prediction, mw, mh)


# ---------------------------------------------------------------------------
# Wrapper reproducing SegmentationLoss.forward
# ---------------------------------------------------------------------------
def segmentation_loss(prediction, target):
    B, C, D, H, W = prediction.shape
    V = D * H * W
    assert V % 128 == 0, "D*H*W must be a multiple of 128 for the lane layout"
    assert D % 2 == 0 and D >= 4, "D must be even (>= 4)"
    assert H % 8 == 0 and W % 8 == 0, "H and W must be multiples of 8"

    # ---- masked NLL / center-Dice statistics (tiled, accumulated in VMEM) ----
    Vr = V // 128
    tile_vr = min(TILE_VR_MAX, _round_up(Vr, 32))
    nvb = -(-Vr // tile_vr)
    nsplit = 2 if nvb >= 2 else 1                    # keep both v7x cores busy at B==1
    nk = -(-nvb // nsplit)
    Vr_pad = nsplit * nk * tile_vr

    pred_r = prediction.reshape(B, C, Vr, 128)
    tgt_r = target.astype(jnp.int8).reshape(B, Vr, 128)
    if Vr_pad != Vr:
        pad = Vr_pad - Vr
        pred_r = jnp.pad(pred_r, ((0, 0), (0, 0), (0, pad), (0, 0)))
        tgt_r = jnp.pad(tgt_r, ((0, 0), (0, pad), (0, 0)), constant_values=-1)

    stats = _stats_call(pred_r, tgt_r, tile_vr, nsplit, nk)   # (B, nsplit, 16, 128)
    s = jnp.sum(stats, axis=(1, 3))                           # (B, 16)
    light_cnt, heavy_cnt, wnll = s[:, 0], s[:, 1], s[:, 2]
    i_l, p2_l, t2_l = s[:, 3], s[:, 4], s[:, 5]
    i_h, p2_h, t2_h = s[:, 6], s[:, 7], s[:, 8]

    weight_sum = light_cnt + FALSE_WEIGHT * heavy_cnt
    valid = (light_cnt + heavy_cnt) > 0                       # target[i].max() != -1
    safe_ws = jnp.maximum(weight_sum, 1.0)
    nll_i = jnp.where(valid, wnll / safe_ws, 0.0)

    # center Dice (denominator clamp(min=eps)); each class term is included when
    # its voxel count > 0 and (2 in target or 5 in target), exactly as in the
    # reference (no per-class gating on that class's own center presence).
    dice_l = (1.0 - 2.0 * i_l / jnp.maximum(p2_l + t2_l, EPS)) * light_cnt
    dice_h = (1.0 - 2.0 * i_h / jnp.maximum(p2_h + t2_h, EPS)) * heavy_cnt * FALSE_WEIGHT
    has_center = (t2_l + t2_h) > 0                            # 2 in target or 5 in target
    center_i = jnp.where(valid & has_center, (dice_l + dice_h) / safe_ws, 0.0)

    # ---- fused smooth-loss kernel (exact separable operator matrices) --------
    khw = _gauss1d(5, SIGMA_HW)
    dw_np, Wh = _down_matrix(W, khw, stride=2, pad=2)
    uw_np = _upsmooth_matrix(Wh, W, khw, pad=2)
    dh_np, Hh = _down_matrix(H, khw, stride=2, pad=2)
    uh_np = _upsmooth_matrix(Hh, H, khw, pad=2)
    mw = jnp.asarray(dw_np @ uw_np, jnp.float32)     # (W, W) right-multiply composite
    mh = jnp.asarray(dh_np @ uh_np, jnp.float32)     # (H, H) right-multiply composite

    smooth = _smooth_call(prediction, mw, mh)        # (B, 8, 128)
    smooth_i = smooth[:, 0, 0]

    validf = valid.astype(jnp.float32)
    # The reference asserts count != 0; the safe max only changes the (otherwise
    # asserting) degenerate all-invalid case, keeping the kernel NaN-free.
    count = jnp.maximum(jnp.sum(validf), 1.0)
    nll_loss = jnp.sum(nll_i) / count
    center_loss = jnp.sum(center_i) / count
    smooth_loss = jnp.sum(validf * smooth_i) / count
    return nll_loss + center_loss * 5.0 + smooth_loss * 1.0


if __name__ == "__main__":
    key = jax.random.PRNGKey(0)
    B, C, D, H, W = 2, 3, 8, 16, 16          # 3 classes: bg / border / center
    k1, k2 = jax.random.split(key)
    logits = jax.random.normal(k1, (B, C, D, H, W), jnp.float32)
    prediction = jax.nn.log_softmax(logits, axis=1)        # log-probs (NLL input)
    target = jax.random.randint(k2, (B, D, H, W), -1, 6).astype(jnp.int32)

    loss = jax.jit(segmentation_loss)(prediction, target)
    loss = jax.block_until_ready(loss)
    assert bool(jnp.isfinite(loss))
    print("KERNEL_OK")
</pallas_src>

<mosaic_0001>
module attributes {stable_mosaic.version = 11 : i64} {
  func.func @stats_kernel(%arg0: i32, %arg1: i32, %arg2: i32, %arg3: memref<1x3x32x128xf32, #tpu.memory_space<vmem>>, %arg4: memref<1x32x128xi8, #tpu.memory_space<vmem>>, %arg5: memref<1x1x16x128xf32, #tpu.memory_space<vmem>>) attributes {dimension_semantics = [#tpu.dimension_semantics<parallel>, #tpu.dimension_semantics<parallel>, #tpu.dimension_semantics<arbitrary>], iteration_bounds = array<i64: 2, 1, 1>, scalar_prefetch = 0 : i64, scratch_operands = 0 : i64, tpu.core_type = #tpu.core_type<tc>, window_params = [{transform_indices = @transform_0, window_bounds = array<i64: 1, 3, 32, 128>}, {transform_indices = @transform_1, window_bounds = array<i64: 1, 32, 128>}, {transform_indices = @transform_2, window_bounds = array<i64: 1, 1, 16, 128>}]} {
    %c0_i32 = arith.constant 0 : i32
    %0 = arith.cmpi eq, %arg2, %c0_i32 : i32
    %1 = arith.extui %0 : i1 to i32
    %c0_i32_0 = arith.constant 0 : i32
    %2 = arith.cmpi ne, %1, %c0_i32_0 : i32
    scf.if %2 {
      %cst_33 = arith.constant 0.000000e+00 : f32
      %93 = vector.broadcast %cst_33 : f32 to vector<1x1x16x128xf32>
      %c0_34 = arith.constant 0 : index
      %c0_35 = arith.constant 0 : index
      %c0_36 = arith.constant 0 : index
      %c0_37 = arith.constant 0 : index
      %94 = vector.load %arg5[%c0_34, %c0_35, %c0_36, %c0_37] : memref<1x1x16x128xf32, #tpu.memory_space<vmem>>, vector<1x1x16x128xf32>
      tpu.vector_store %arg5[%c0_34, %c0_35, %c0_36, %c0_37], %93 {strides = array<i32>} : memref<1x1x16x128xf32, #tpu.memory_space<vmem>>, vector<1x1x16x128xf32>,
    } else {
    }
    %c0 = arith.constant 0 : index
    %c0_1 = arith.constant 0 : index
    %c0_2 = arith.constant 0 : index
    %c0_3 = arith.constant 0 : index
    %3 = vector.load %arg3[%c0, %c0_1, %c0_2, %c0_3] : memref<1x3x32x128xf32, #tpu.memory_space<vmem>>, vector<1x3x32x128xf32>
    %4 = vector.shape_cast %3 : vector<1x3x32x128xf32> to vector<3x32x128xf32>
    %c0_4 = arith.constant 0 : index
    %c0_5 = arith.constant 0 : index
    %c0_6 = arith.constant 0 : index
    %5 = vector.load %arg4[%c0_4, %c0_5, %c0_6] : memref<1x32x128xi8, #tpu.memory_space<vmem>>, vector<1x32x128xi8>
    %6 = vector.shape_cast %5 : vector<1x32x128xi8> to vector<32x128xi8>
    %7 = arith.extsi %6 : vector<32x128xi8> to vector<32x128xi32>
    %c0_i32_7 = arith.constant 0 : i32
    %8 = vector.broadcast %c0_i32_7 : i32 to vector<32x128xi32>
    %9 = arith.cmpi sge, %7, %8 : vector<32x128xi32>
    %10 = arith.extui %9 : vector<32x128xi1> to vector<32x128xi32>
    %11 = arith.sitofp %10 : vector<32x128xi32> to vector<32x128xf32>
    %c2_i32 = arith.constant 2 : i32
    %12 = vector.broadcast %c2_i32 : i32 to vector<32x128xi32>
    %13 = arith.cmpi sgt, %7, %12 : vector<32x128xi32>
    %14 = arith.extui %13 : vector<32x128xi1> to vector<32x128xi32>
    %15 = arith.sitofp %14 : vector<32x128xi32> to vector<32x128xf32>
    %16 = arith.subf %11, %15 : vector<32x128xf32>
    %c3_i32 = arith.constant 3 : i32
    %17 = vector.broadcast %c3_i32 : i32 to vector<32x128xi32>
    %18 = arith.subi %7, %17 : vector<32x128xi32>
    %19 = arith.select %13, %18, %7 : vector<32x128xi1>, vector<32x128xi32>
    %cst = arith.constant 0.000000e+00 : f32
    %20 = vector.broadcast %cst : f32 to vector<32x128xf32>
    %c0_i32_8 = arith.constant 0 : i32
    %21 = vector.broadcast %c0_i32_8 : i32 to vector<32x128xi32>
    %22 = arith.cmpi eq, %19, %21 : vector<32x128xi32>
    %23 = vector.extract_strided_slice %4 {offsets = [0, 0, 0], sizes = [1, 32, 128], strides = [1, 1, 1]} : vector<3x32x128xf32> to vector<1x32x128xf32>
    %24 = vector.shape_cast %23 : vector<1x32x128xf32> to vector<32x128xf32>
    %cst_9 = arith.constant 0.000000e+00 : f32
    %25 = vector.broadcast %cst_9 : f32 to vector<32x128xf32>
    %26 = arith.select %22, %24, %25 : vector<32x128xi1>, vector<32x128xf32>
    %27 = arith.subf %20, %26 : vector<32x128xf32>
    %c1_i32 = arith.constant 1 : i32
    %28 = vector.broadcast %c1_i32 : i32 to vector<32x128xi32>
    %29 = arith.cmpi eq, %19, %28 : vector<32x128xi32>
    %30 = vector.extract_strided_slice %4 {offsets = [1, 0, 0], sizes = [1, 32, 128], strides = [1, 1, 1]} : vector<3x32x128xf32> to vector<1x32x128xf32>
    %31 = vector.shape_cast %30 : vector<1x32x128xf32> to vector<32x128xf32>
    %cst_10 = arith.constant 0.000000e+00 : f32
    %32 = vector.broadcast %cst_10 : f32 to vector<32x128xf32>
    %33 = arith.select %29, %31, %32 : vector<32x128xi1>, vector<32x128xf32>
    %34 = arith.subf %27, %33 : vector<32x128xf32>
    %c2_i32_11 = arith.constant 2 : i32
    %35 = vector.broadcast %c2_i32_11 : i32 to vector<32x128xi32>
    %36 = arith.cmpi eq, %19, %35 : vector<32x128xi32>
    %37 = vector.extract_strided_slice %4 {offsets = [2, 0, 0], sizes = [1, 32, 128], strides = [1, 1, 1]} : vector<3x32x128xf32> to vector<1x32x128xf32>
    %38 = vector.shape_cast %37 : vector<1x32x128xf32> to vector<32x128xf32>
    %cst_12 = arith.constant 0.000000e+00 : f32
    %39 = vector.broadcast %cst_12 : f32 to vector<32x128xf32>
    %40 = arith.select %36, %38, %39 : vector<32x128xi1>, vector<32x128xf32>
    %41 = arith.subf %34, %40 : vector<32x128xf32>
    %42 = vector.extract_strided_slice %4 {offsets = [2, 0, 0], sizes = [1, 32, 128], strides = [1, 1, 1]} : vector<3x32x128xf32> to vector<1x32x128xf32>
    %43 = vector.shape_cast %42 : vector<1x32x128xf32> to vector<32x128xf32>
    %44 = math.exp %43 : vector<32x128xf32>
    %c2_i32_13 = arith.constant 2 : i32
    %45 = vector.broadcast %c2_i32_13 : i32 to vector<32x128xi32>
    %46 = arith.cmpi eq, %19, %45 : vector<32x128xi32>
    %47 = arith.extui %46 : vector<32x128xi1> to vector<32x128xi32>
    %48 = arith.sitofp %47 : vector<32x128xi32> to vector<32x128xf32>
    %49 = arith.mulf %48, %16 : vector<32x128xf32>
    %50 = arith.mulf %48, %15 : vector<32x128xf32>
    %cst_14 = arith.constant 1.000000e+01 : f32
    %51 = vector.broadcast %cst_14 : f32 to vector<32x128xf32>
    %52 = arith.mulf %51, %15 : vector<32x128xf32>
    %53 = arith.addf %16, %52 : vector<32x128xf32>
    %54 = arith.mulf %44, %44 : vector<32x128xf32>
    %cst_15 = arith.constant 0.000000e+00 : f32
    %55 = vector.broadcast %cst_15 : f32 to vector<128xf32>
    %cst_16 = arith.constant dense<0.000000e+00> : vector<128xf32>
    %56 = vector.multi_reduction <add>, %16, %cst_16 [0] : vector<32x128xf32> to vector<128xf32>
    %cst_17 = arith.constant dense<0.000000e+00> : vector<128xf32>
    %57 = vector.multi_reduction <add>, %15, %cst_17 [0] : vector<32x128xf32> to vector<128xf32>
    %58 = arith.mulf %53, %41 : vector<32x128xf32>
    %cst_18 = arith.constant dense<0.000000e+00> : vector<128xf32>
    %59 = vector.multi_reduction <add>, %58, %cst_18 [0] : vector<32x128xf32> to vector<128xf32>
    %60 = arith.mulf %44, %49 : vector<32x128xf32>
    %cst_19 = arith.constant dense<0.000000e+00> : vector<128xf32>
    %61 = vector.multi_reduction <add>, %60, %cst_19 [0] : vector<32x128xf32> to vector<128xf32>
    %62 = arith.mulf %16, %54 : vector<32x128xf32>
    %cst_20 = arith.constant dense<0.000000e+00> : vector<128xf32>
    %63 = vector.multi_reduction <add>, %62, %cst_20 [0] : vector<32x128xf32> to vector<128xf32>
    %cst_21 = arith.constant dense<0.000000e+00> : vector<128xf32>
    %64 = vector.multi_reduction <add>, %49, %cst_21 [0] : vector<32x128xf32> to vector<128xf32>
    %65 = arith.mulf %44, %50 : vector<32x128xf32>
    %cst_22 = arith.constant dense<0.000000e+00> : vector<128xf32>
    %66 = vector.multi_reduction <add>, %65, %cst_22 [0] : vector<32x128xf32> to vector<128xf32>
    %67 = arith.mulf %15, %54 : vector<32x128xf32>
    %cst_23 = arith.constant dense<0.000000e+00> : vector<128xf32>
    %68 = vector.multi_reduction <add>, %67, %cst_23 [0] : vector<32x128xf32> to vector<128xf32>
    %cst_24 = arith.constant dense<0.000000e+00> : vector<128xf32>
    %69 = vector.multi_reduction <add>, %50, %cst_24 [0] : vector<32x128xf32> to vector<128xf32>
    %c0_25 = arith.constant 0 : index
    %c0_26 = arith.constant 0 : index
    %c0_27 = arith.constant 0 : index
    %c0_28 = arith.constant 0 : index
    %70 = vector.load %arg5[%c0_25, %c0_26, %c0_27, %c0_28] : memref<1x1x16x128xf32, #tpu.memory_space<vmem>>, vector<1x1x16x128xf32>
    %71 = vector.shape_cast %70 : vector<1x1x16x128xf32> to vector<16x128xf32>
    %72 = vector.shape_cast %56 : vector<128xf32> to vector<1x128xf32>
    %73 = vector.shape_cast %57 : vector<128xf32> to vector<1x128xf32>
    %74 = vector.shape_cast %59 : vector<128xf32> to vector<1x128xf32>
    %75 = vector.shape_cast %61 : vector<128xf32> to vector<1x128xf32>
    %76 = vector.shape_cast %63 : vector<128xf32> to vector<1x128xf32>
    %77 = vector.shape_cast %64 : vector<128xf32> to vector<1x128xf32>
    %78 = vector.shape_cast %66 : vector<128xf32> to vector<1x128xf32>
    %79 = vector.shape_cast %68 : vector<128xf32> to vector<1x128xf32>
    %80 = vector.shape_cast %69 : vector<128xf32> to vector<1x128xf32>
    %81 = vector.shape_cast %55 : vector<128xf32> to vector<1x128xf32>
    %82 = vector.shape_cast %55 : vector<128xf32> to vector<1x128xf32>
    %83 = vector.shape_cast %55 : vector<128xf32> to vector<1x128xf32>
    %84 = vector.shape_cast %55 : vector<128xf32> to vector<1x128xf32>
    %85 = vector.shape_cast %55 : vector<128xf32> to vector<1x128xf32>
    %86 = vector.shape_cast %55 : vector<128xf32> to vector<1x128xf32>
    %87 = vector.shape_cast %55 : vector<128xf32> to vector<1x128xf32>
    %88 = tpu.concatenate %72, %73, %74, %75, %76, %77, %78, %79, %80, %81, %82, %83, %84, %85, %86, %87 in 0 : vector<1x128xf32>, vector<1x128xf32>, vector<1x128xf32>, vector<1x128xf32>, vector<1x128xf32>, vector<1x128xf32>, vector<1x128xf32>, vector<1x128xf32>, vector<1x128xf32>, vector<1x128xf32>, vector<1x128xf32>, vector<1x128xf32>, vector<1x128xf32>, vector<1x128xf32>, vector<1x128xf32>, vector<1x128xf32> -> vector<16x128xf32>
    %89 = arith.addf %71, %88 : vector<16x128xf32>
    %c0_29 = arith.constant 0 : index
    %c0_30 = arith.constant 0 : index
    %c0_31 = arith.constant 0 : index
    %c0_32 = arith.constant 0 : index
    %90 = vector.load %arg5[%c0_29, %c0_30, %c0_31, %c0_32] : memref<1x1x16x128xf32, #tpu.memory_space<vmem>>, vector<1x1x16x128xf32>
    %91 = vector.shape_cast %90 : vector<1x1x16x128xf32> to vector<16x128xf32>
    %92 = vector.shape_cast %89 : vector<16x128xf32> to vector<1x1x16x128xf32>
    tpu.vector_store %arg5[%c0_29, %c0_30, %c0_31, %c0_32], %92 {strides = array<i32>} : memref<1x1x16x128xf32, #tpu.memory_space<vmem>>, vector<1x1x16x128xf32>,
    return
  }
  func.func @transform_0(%arg0: i32, %arg1: i32, %arg2: i32) -> (i32, i32, i32, i32) {
    %c1_i32 = arith.constant 1 : i32
    %0 = arith.muli %arg1, %c1_i32 : i32
    %1 = arith.addi %0, %arg2 : i32
    %c0_i32 = arith.constant 0 : i32
    %c0_i32_0 = arith.constant 0 : i32
    %c0_i32_1 = arith.constant 0 : i32
    return %arg0, %c0_i32, %1, %c0_i32_0 : i32, i32, i32, i32
  }
  func.func @transform_1(%arg0: i32, %arg1: i32, %arg2: i32) -> (i32, i32, i32) {
    %c1_i32 = arith.constant 1 : i32
    %0 = arith.muli %arg1, %c1_i32 : i32
    %1 = arith.addi %0, %arg2 : i32
    %c0_i32 = arith.constant 0 : i32
    %c0_i32_0 = arith.constant 0 : i32
    return %arg0, %1, %c0_i32 : i32, i32, i32
  }
  func.func @transform_2(%arg0: i32, %arg1: i32, %arg2: i32) -> (i32, i32, i32, i32) {
    %c0_i32 = arith.constant 0 : i32
    %c0_i32_0 = arith.constant 0 : i32
    %c0_i32_1 = arith.constant 0 : i32
    return %arg0, %arg1, %c0_i32, %c0_i32_0 : i32, i32, i32, i32
  }
}

module attributes {stable_mosaic.version = 11 : i64} {
  func.func @smooth_kernel(%arg0: i32, %arg1: memref<1x1x8x16x16xf32, #tpu.memory_space<vmem>>, %arg2: memref<16x16xf32, #tpu.memory_space<vmem>>, %arg3: memref<16x16xf32, #tpu.memory_space<vmem>>, %arg4: memref<1x8x128xf32, #tpu.memory_space<vmem>>) attributes {dimension_semantics = [#tpu.dimension_semantics<parallel>], iteration_bounds = array<i64: 2>, scalar_prefetch = 0 : i64, scratch_operands = 0 : i64, tpu.core_type = #tpu.core_type<tc>, window_params = [{transform_indices = @transform_0, window_bounds = array<i64: 1, 1, 8, 16, 16>}, {pipeline_mode = #tpu.pipeline_mode<synchronous>, transform_indices = @transform_1, window_bounds = array<i64: 16, 16>}, {pipeline_mode = #tpu.pipeline_mode<synchronous>, transform_indices = @transform_2, window_bounds = array<i64: 16, 16>}, {transform_indices = @transform_3, window_bounds = array<i64: 1, 8, 128>}]} {
    %c0 = arith.constant 0 : index
    %c0_0 = arith.constant 0 : index
    %c0_1 = arith.constant 0 : index
    %c0_2 = arith.constant 0 : index
    %c0_3 = arith.constant 0 : index
    %0 = vector.load %arg1[%c0, %c0_0, %c0_1, %c0_2, %c0_3] : memref<1x1x8x16x16xf32, #tpu.memory_space<vmem>>, vector<1x1x8x16x16xf32>
    %1 = vector.shape_cast %0 : vector<1x1x8x16x16xf32> to vector<8x16x16xf32>
    %2 = vector.shape_cast %1 : vector<8x16x16xf32> to vector<4x2x16x16xf32>
    %3 = vector.extract_strided_slice %2 {offsets = [0, 0, 0, 0], sizes = [4, 1, 16, 16], strides = [1, 1, 1, 1]} : vector<4x2x16x16xf32> to vector<4x1x16x16xf32>
    %4 = vector.shape_cast %3 : vector<4x1x16x16xf32> to vector<4x16x16xf32>
    %5 = math.exp %4 : vector<4x16x16xf32>
    %6 = vector.extract_strided_slice %2 {offsets = [0, 1, 0, 0], sizes = [4, 1, 16, 16], strides = [1, 1, 1, 1]} : vector<4x2x16x16xf32> to vector<4x1x16x16xf32>
    %7 = vector.shape_cast %6 : vector<4x1x16x16xf32> to vector<4x16x16xf32>
    %8 = math.exp %7 : vector<4x16x16xf32>
    %9 = vector.extract_strided_slice %5 {offsets = [0, 0, 0], sizes = [1, 16, 16], strides = [1, 1, 1]} : vector<4x16x16xf32> to vector<1x16x16xf32>
    %cst = arith.constant 0.451862752 : f32
    %10 = vector.broadcast %cst : f32 to vector<1x16x16xf32>
    %11 = arith.mulf %10, %9 : vector<1x16x16xf32>
    %12 = vector.extract_strided_slice %8 {offsets = [0, 0, 0], sizes = [1, 16, 16], strides = [1, 1, 1]} : vector<4x16x16xf32> to vector<1x16x16xf32>
    %cst_4 = arith.constant 0.274068624 : f32
    %13 = vector.broadcast %cst_4 : f32 to vector<1x16x16xf32>
    %14 = arith.mulf %13, %12 : vector<1x16x16xf32>
    %15 = arith.addf %11, %14 : vector<1x16x16xf32>
    %16 = vector.extract_strided_slice %8 {offsets = [0, 0, 0], sizes = [3, 16, 16], strides = [1, 1, 1]} : vector<4x16x16xf32> to vector<3x16x16xf32>
    %cst_5 = arith.constant 0.274068624 : f32
    %17 = vector.broadcast %cst_5 : f32 to vector<3x16x16xf32>
    %18 = arith.mulf %17, %16 : vector<3x16x16xf32>
    %19 = vector.extract_strided_slice %5 {offsets = [1, 0, 0], sizes = [3, 16, 16], strides = [1, 1, 1]} : vector<4x16x16xf32> to vector<3x16x16xf32>
    %cst_6 = arith.constant 0.451862752 : f32
    %20 = vector.broadcast %cst_6 : f32 to vector<3x16x16xf32>
    %21 = arith.mulf %20, %19 : vector<3x16x16xf32>
    %22 = arith.addf %18, %21 : vector<3x16x16xf32>
    %23 = vector.extract_strided_slice %8 {offsets = [1, 0, 0], sizes = [3, 16, 16], strides = [1, 1, 1]} : vector<4x16x16xf32> to vector<3x16x16xf32>
    %cst_7 = arith.constant 0.274068624 : f32
    %24 = vector.broadcast %cst_7 : f32 to vector<3x16x16xf32>
    %25 = arith.mulf %24, %23 : vector<3x16x16xf32>
    %26 = arith.addf %22, %25 : vector<3x16x16xf32>
    %27 = tpu.concatenate %15, %26 in 0 : vector<1x16x16xf32>, vector<3x16x16xf32> -> vector<4x16x16xf32>
    %28 = vector.shape_cast %27 : vector<4x16x16xf32> to vector<64x16xf32>
    %c0_8 = arith.constant 0 : index
    %c0_9 = arith.constant 0 : index
    %29 = vector.load %arg2[%c0_8, %c0_9] : memref<16x16xf32, #tpu.memory_space<vmem>>, vector<16x16xf32>
    %cst_10 = arith.constant dense<0.000000e+00> : vector<64x16xf32>
    %30 = tpu.matmul %28, %29, %cst_10 {dimension_numbers = #tpu.dot_dimension_numbers<[1], [0], [0], [1], [0, 0, 1, 1], [], []>} : vector<64x16xf32>, vector<16x16xf32>, vector<64x16xf32> -> vector<64x16xf32>
    %31 = vector.shape_cast %30 : vector<64x16xf32> to vector<4x16x16xf32>
    %32 = tpu.transpose %31, [0, 2, 1] : vector<4x16x16xf32> -> vector<4x16x16xf32>
    %33 = vector.shape_cast %32 : vector<4x16x16xf32> to vector<64x16xf32>
    %c0_11 = arith.constant 0 : index
    %c0_12 = arith.constant 0 : index
    %34 = vector.load %arg3[%c0_11, %c0_12] : memref<16x16xf32, #tpu.memory_space<vmem>>, vector<16x16xf32>
    %cst_13 = arith.constant dense<0.000000e+00> : vector<64x16xf32>
    %35 = tpu.matmul %33, %34, %cst_13 {dimension_numbers = #tpu.dot_dimension_numbers<[1], [0], [0], [1], [0, 0, 1, 1], [], []>} : vector<64x16xf32>, vector<16x16xf32>, vector<64x16xf32> -> vector<64x16xf32>
    %36 = vector.shape_cast %35 : vector<64x16xf32> to vector<4x16x16xf32>
    %37 = tpu.transpose %36, [0, 2, 1] : vector<4x16x16xf32> -> vector<4x16x16xf32>
    %38 = vector.extract_strided_slice %5 {offsets = [0, 0, 0], sizes = [1, 16, 16], strides = [1, 1, 1]} : vector<4x16x16xf32> to vector<1x16x16xf32>
    %39 = vector.extract_strided_slice %37 {offsets = [0, 0, 0], sizes = [1, 16, 16], strides = [1, 1, 1]} : vector<4x16x16xf32> to vector<1x16x16xf32>
    %cst_14 = arith.constant 0.725931406 : f32
    %40 = vector.broadcast %cst_14 : f32 to vector<1x16x16xf32>
    %41 = arith.mulf %40, %39 : vector<1x16x16xf32>
    %42 = arith.subf %38, %41 : vector<1x16x16xf32>
    %43 = math.absf %42 : vector<1x16x16xf32>
    %44 = vector.shape_cast %43 : vector<1x16x16xf32> to vector<1x1x16x16xf32>
    %cst_15 = arith.constant dense<0.000000e+00> : vector<1xf32>
    %45 = vector.multi_reduction <add>, %44, %cst_15 [1, 2, 3] : vector<1x1x16x16xf32> to vector<1xf32>
    %46 = vector.shape_cast %45 : vector<1xf32> to vector<1x1x1x1xf32>
    %47 = vector.extract %46[0, 0, 0, 0] : f32 from vector<1x1x1x1xf32>
    %48 = vector.extract_strided_slice %5 {offsets = [1, 0, 0], sizes = [3, 16, 16], strides = [1, 1, 1]} : vector<4x16x16xf32> to vector<3x16x16xf32>
    %49 = vector.extract_strided_slice %37 {offsets = [1, 0, 0], sizes = [3, 16, 16], strides = [1, 1, 1]} : vector<4x16x16xf32> to vector<3x16x16xf32>
    %cst_16 = arith.constant 0.725931406 : f32
    %50 = vector.broadcast %cst_16 : f32 to vector<3x16x16xf32>
    %51 = arith.mulf %50, %49 : vector<3x16x16xf32>
    %52 = vector.extract_strided_slice %37 {offsets = [0, 0, 0], sizes = [3, 16, 16], strides = [1, 1, 1]} : vector<4x16x16xf32> to vector<3x16x16xf32>
    %cst_17 = arith.constant 0.274068624 : f32
    %53 = vector.broadcast %cst_17 : f32 to vector<3x16x16xf32>
    %54 = arith.mulf %53, %52 : vector<3x16x16xf32>
    %55 = arith.addf %51, %54 : vector<3x16x16xf32>
    %56 = arith.subf %48, %55 : vector<3x16x16xf32>
    %57 = math.absf %56 : vector<3x16x16xf32>
    %58 = vector.shape_cast %57 : vector<3x16x16xf32> to vector<1x3x16x16xf32>
    %cst_18 = arith.constant dense<0.000000e+00> : vector<1xf32>
    %59 = vector.multi_reduction <add>, %58, %cst_18 [1, 2, 3] : vector<1x3x16x16xf32> to vector<1xf32>
    %60 = vector.shape_cast %59 : vector<1xf32> to vector<1x1x1x1xf32>
    %61 = vector.extract %60[0, 0, 0, 0] : f32 from vector<1x1x1x1xf32>
    %62 = arith.addf %47, %61 : f32
    %63 = vector.extract_strided_slice %8 {offsets = [0, 0, 0], sizes = [3, 16, 16], strides = [1, 1, 1]} : vector<4x16x16xf32> to vector<3x16x16xf32>
    %64 = vector.extract_strided_slice %37 {offsets = [0, 0, 0], sizes = [3, 16, 16], strides = [1, 1, 1]} : vector<4x16x16xf32> to vector<3x16x16xf32>
    %cst_19 = arith.constant 0.725931406 : f32
    %65 = vector.broadcast %cst_19 : f32 to vector<3x16x16xf32>
    %66 = arith.mulf %65, %64 : vector<3x16x16xf32>
    %67 = vector.extract_strided_slice %37 {offsets = [1, 0, 0], sizes = [3, 16, 16], strides = [1, 1, 1]} : vector<4x16x16xf32> to vector<3x16x16xf32>
    %cst_20 = arith.constant 0.274068624 : f32
    %68 = vector.broadcast %cst_20 : f32 to vector<3x16x16xf32>
    %69 = arith.mulf %68, %67 : vector<3x16x16xf32>
    %70 = arith.addf %66, %69 : vector<3x16x16xf32>
    %71 = arith.subf %63, %70 : vector<3x16x16xf32>
    %72 = math.absf %71 : vector<3x16x16xf32>
    %73 = vector.shape_cast %72 : vector<3x16x16xf32> to vector<1x3x16x16xf32>
    %cst_21 = arith.constant dense<0.000000e+00> : vector<1xf32>
    %74 = vector.multi_reduction <add>, %73, %cst_21 [1, 2, 3] : vector<1x3x16x16xf32> to vector<1xf32>
    %75 = vector.shape_cast %74 : vector<1xf32> to vector<1x1x1x1xf32>
    %76 = vector.extract %75[0, 0, 0, 0] : f32 from vector<1x1x1x1xf32>
    %77 = arith.addf %62, %76 : f32
    %78 = vector.extract_strided_slice %8 {offsets = [3, 0, 0], sizes = [1, 16, 16], strides = [1, 1, 1]} : vector<4x16x16xf32> to vector<1x16x16xf32>
    %79 = vector.extract_strided_slice %37 {offsets = [3, 0, 0], sizes = [1, 16, 16], strides = [1, 1, 1]} : vector<4x16x16xf32> to vector<1x16x16xf32>
    %cst_22 = arith.constant 0.725931406 : f32
    %80 = vector.broadcast %cst_22 : f32 to vector<1x16x16xf32>
    %81 = arith.mulf %80, %79 : vector<1x16x16xf32>
    %82 = arith.subf %78, %81 : vector<1x16x16xf32>
    %83 = math.absf %82 : vector<1x16x16xf32>
    %84 = vector.shape_cast %83 : vector<1x16x16xf32> to vector<1x1x16x16xf32>
    %cst_23 = arith.constant dense<0.000000e+00> : vector<1xf32>
    %85 = vector.multi_reduction <add>, %84, %cst_23 [1, 2, 3] : vector<1x1x16x16xf32> to vector<1xf32>
    %86 = vector.shape_cast %85 : vector<1xf32> to vector<1x1x1x1xf32>
    %87 = vector.extract %86[0, 0, 0, 0] : f32 from vector<1x1x1x1xf32>
    %88 = arith.addf %77, %87 : f32
    %cst_24 = arith.constant 0.000000e+00 : f32
    %89 = vector.broadcast %cst_24 : f32 to vector<8x128xf32>
    %cst_25 = arith.constant 4.8828125E-4 : f32
    %90 = arith.mulf %88, %cst_25 : f32
    %91 = vector.broadcast %90 : f32 to vector<8x128xf32>
    %92 = arith.addf %89, %91 : vector<8x128xf32>
    %c0_26 = arith.constant 0 : index
    %c0_27 = arith.constant 0 : index
    %c0_28 = arith.constant 0 : index
    %93 = vector.load %arg4[%c0_26, %c0_27, %c0_28] : memref<1x8x128xf32, #tpu.memory_space<vmem>>, vector<1x8x128xf32>
    %94 = vector.shape_cast %93 : vector<1x8x128xf32> to vector<8x128xf32>
    %95 = vector.shape_cast %92 : vector<8x128xf32> to vector<1x8x128xf32>
    tpu.vector_store %arg4[%c0_26, %c0_27, %c0_28], %95 {strides = array<i32>} : memref<1x8x128xf32, #tpu.memory_space<vmem>>, vector<1x8x128xf32>,
    return
  }
  func.func @transform_0(%arg0: i32) -> (i32, i32, i32, i32, i32) {
    %c2_i32 = arith.constant 2 : i32
    %c0_i32 = arith.constant 0 : i32
    %c0_i32_0 = arith.constant 0 : i32
    %c0_i32_1 = arith.constant 0 : i32
    %c0_i32_2 = arith.constant 0 : i32
    return %arg0, %c2_i32, %c0_i32, %c0_i32_0, %c0_i32_1 : i32, i32, i32, i32, i32
  }
  func.func @transform_1(%arg0: i32) -> (i32, i32) {
    %c0_i32 = arith.constant 0 : i32
    %c0_i32_0 = arith.constant 0 : i32
    %c0_i32_1 = arith.constant 0 : i32
    return %c0_i32, %c0_i32_0 : i32, i32
  }
  func.func @transform_2(%arg0: i32) -> (i32, i32) {
    %c0_i32 = arith.constant 0 : i32
    %c0_i32_0 = arith.constant 0 : i32
    %c0_i32_1 = arith.constant 0 : i32
    return %c0_i32, %c0_i32_0 : i32, i32
  }
  func.func @transform_3(%arg0: i32) -> (i32, i32, i32) {
    %c0_i32 = arith.constant 0 : i32
    %c0_i32_0 = arith.constant 0 : i32
    %c0_i32_1 = arith.constant 0 : i32
    return %arg0, %c0_i32, %c0_i32_0 : i32, i32, i32
  }
}

</mosaic_0001>

<llo_original>
// kernel: segmentation_loss.2
$region0: #{segmentation_loss.2}
  #allocation0 [shape = 'u32[]', space=smem, size = 0x4, offset = 0x4, fixed_abs, tag = 'smem constant byte address 0x4 - core index']
  #allocation1 [shape = 'u32[144,128]{1,0:T(1,128)}', space=vmem, size = 0x12000, scoped, tag = 'internal scratch']
  %s0 = inlined_call_operand.vmem [shape: f32[2,3,32,128], index: 0, kind: input, shape index: {}]
  %s1 = inlined_call_operand.vmem [shape: s8[2,32,128], index: 1, kind: input, shape index: {}]
  %s2 = inlined_call_operand.vmem [shape: f32[2,1,16,128], index: 2, kind: output, shape index: {}]
  %s3 = sld [smem:[#allocation0]]
  $region45: #{segmentation_loss.2} parent=0
    _
  %s5 = ssub.s32 1, %s3
  %s6 = scalar_select 0, %s5, %s3
  loop: start=0, step=1, limit=4
  $region2: #{segmentation_loss.2} parent=0 // loop_pre_header
    _
  $region3: #{segmentation_loss.2} parent=0 // loop_header
    %s8 = sphi 0, %s12
    %p9 = scmp.ge.s32.totalorder %s8, 4
    %s15 = sphi 0, %s34
    %s16 = sphi 0, %s30
    %s17 = sphi 0, %s26
    %s18 = sphi 0, %s15
    %s19 = sphi 0, %s16
    %s20 = sphi 0, %s17
    %s21 = sphi 0, %s18
    %s22 = sphi 0, %s19
    %s23 = sphi 0, %s20
    %s41 = sphi 0, %s43
    %s44 = sphi 0, %s41
    %s45 = sphi 0, %s44
    %s61 = sphi 0, %s45
    %s71 = sphi 0, %s73
    %s74 = sphi 0, %s71
    %s75 = sphi 0, %s74
    %s91 = sphi 0, %s75
    %s99 = sphi 0, %s101
    %s102 = sphi 0, %s99
    %s103 = sphi 0, %s102
    %s119 = sphi 0, %s103
  $region4: #{segmentation_loss.2} parent=0 // loop_header_branch
    %11 = sbr.rel (%p9) target = $region8
  $region5: #{segmentation_loss.2} parent=0 // loop_body
    %s13 = ssub.s32 %s8, 1
    %s14 = ssub.s32 %s8, 2
    %s24 = sadd.s32 1, %s17
    %p25 = scmp.ge.s32.totalorder %s24, 1
    %s26 = scalar_select %p25, 0, %s24
    %s27 = sadd.s32 1, %s16
    %s28 = scalar_select %p25, %s27, %s16
    %p29 = scmp.ge.s32.totalorder %s28, 1
    %s30 = scalar_select %p29, 0, %s28
    %s31 = sadd.s32 1, %s15
    %s32 = scalar_select %p29, %s31, %s15
    %p33 = scmp.ge.s32.totalorder %s32, 2
    %s34 = scalar_select %p33, 0, %s32
    %s35 = sadd.s32 %s16, %s17
    %s36 = sadd.s32 %s30, %s26
    %s37 = ssub.s32 %s15, %s34
    %s38 = ssub.s32 %s35, %s36
    %s39 = sor.u32 %s37, %s38
    %p40 = scmp.eq.s32.totalorder %s39, 0
    %s42 = sadd.s32 %s41, 1
    %s43 = scalar_select %p40, %s41, %s42
    %p46 = pneg %p40
    %p47 = scmp.eq.s32.totalorder %s8, 1
    %p48 = por %p46, %p47
    %p49 = scmp.ne.s32.totalorder %s41, %s44
    %p50 = scmp.eq.s32.totalorder %s8, 0
    %p51 = por %p49, %p50
    %p52 = scmp.ne.s32.totalorder %s41, %s44
    %p53 = scmp.eq.s32.totalorder %s13, 1
    %p54 = por %p52, %p53
    %p55 = scmp.ne.s32.totalorder %s44, %s45
    %p56 = scmp.eq.s32.totalorder %s13, 0
    %p57 = por %p55, %p56
    %p58 = scmp.ne.s32.totalorder %s44, %s45
    %p59 = scmp.eq.s32.totalorder %s14, 1
    %p60 = por %p58, %p59
    %p62 = scmp.ne.s32.totalorder %s45, %s61
    %p63 = scmp.eq.s32.totalorder %s14, 0
    %p64 = por %p62, %p63
    %s65 = sadd.s32 %s16, %s17
    %s66 = sadd.s32 %s30, %s26
    %s67 = ssub.s32 %s15, %s34
    %s68 = ssub.s32 %s65, %s66
    %s69 = sor.u32 %s67, %s68
    %p70 = scmp.eq.s32.totalorder %s69, 0
    %s72 = sadd.s32 %s71, 1
    %s73 = scalar_select %p70, %s71, %s72
    %p76 = pneg %p70
    %p77 = scmp.eq.s32.totalorder %s8, 1
    %p78 = por %p76, %p77
    %p79 = scmp.ne.s32.totalorder %s71, %s74
    %p80 = scmp.eq.s32.totalorder %s8, 0
    %p81 = por %p79, %p80
    %p82 = scmp.ne.s32.totalorder %s71, %s74
    %p83 = scmp.eq.s32.totalorder %s13, 1
    %p84 = por %p82, %p83
    %p85 = scmp.ne.s32.totalorder %s74, %s75
    %p86 = scmp.eq.s32.totalorder %s13, 0
    %p87 = por %p85, %p86
    %p88 = scmp.ne.s32.totalorder %s74, %s75
    %p89 = scmp.eq.s32.totalorder %s14, 1
    %p90 = por %p88, %p89
    %p92 = scmp.ne.s32.totalorder %s75, %s91
    %p93 = scmp.eq.s32.totalorder %s14, 0
    %p94 = por %p92, %p93
    %s95 = ssub.s32 %s15, %s34
    %s96 = ssub.s32 %s16, %s30
    %s97 = sor.u32 %s95, %s96
    %p98 = scmp.eq.s32.totalorder %s97, 0
    %s100 = sadd.s32 %s99, 1
    %s101 = scalar_select %p98, %s99, %s100
    %p104 = pneg %p98
    %p105 = scmp.eq.s32.totalorder %s8, 1
    %p106 = por %p104, %p105
    %p107 = scmp.ne.s32.totalorder %s99, %s102
    %p108 = scmp.eq.s32.totalorder %s8, 0
    %p109 = por %p107, %p108
    %p110 = scmp.ne.s32.totalorder %s99, %s102
    %p111 = scmp.eq.s32.totalorder %s13, 1
    %p112 = por %p110, %p111
    %p113 = scmp.ne.s32.totalorder %s102, %s103
    %p114 = scmp.eq.s32.totalorder %s13, 0
    %p115 = por %p113, %p114
    %p116 = scmp.ne.s32.totalorder %s102, %s103
    %p117 = scmp.eq.s32.totalorder %s14, 1
    %p118 = por %p116, %p117
    %p120 = scmp.ne.s32.totalorder %s103, %s119
    %p121 = scmp.eq.s32.totalorder %s14, 0
    %p122 = por %p120, %p121
    %p123 = scmp.le.s32.totalorder 1, %s8
    %p124 = scmp.lt.s32.totalorder %s8, 3
    %p125 = pnand %p123, %p124
    %p126 = pneg %p125
    // Predicated region
    $region9: #{segmentation_loss.2} parent=5 // pred_check
      _
    $region10: #{segmentation_loss.2} parent=5 // pred_check_branch
      %128 = sbr.rel (%p125) target = $region12
    $region11: #{segmentation_loss.2} parent=5 // pred_region
      %s129 = ssub.s32 %s8, 1
    $region12: #{segmentation_loss.2} parent=5 // pred_fallthru
      _
    %p130 = scmp.lt.s32.totalorder %s8, 2
    // Predicated region
    $region13: #{segmentation_loss.2} parent=5 // pred_check
      %p131 = pneg %p130
    $region14: #{segmentation_loss.2} parent=5 // pred_check_branch
      %133 = sbr.rel (%p131) target = $region16
    $region15: #{segmentation_loss.2} parent=5 // pred_region
      // Predicated region
      $region17: #{segmentation_loss.2} parent=15 // pred_check
        %p134 = pneg %p51
      $region18: #{segmentation_loss.2} parent=15 // pred_check_branch
        %136 = sbr.rel (%p134) target = $region20
      $region19: #{segmentation_loss.2} parent=15 // pred_region
        %s137 = sadd.s32 %s16, %s17
        %s138 = smul.u32 4, %s137
        %p139 = scmp.lt.s32.totalorder %s15, 1
        %s140 = scalar_select %p139, %s15, 1
        %p141 = scmp.lt.s32.totalorder %s138, 3
        %s142 = scalar_select %p141, %s138, 3
        %s143 = smul.addr %s140, 12
        %s144 = sadd.s32 %s142, %s143
        %s145 = smul.addr %s144, 8
        %s146 = scalar_lea.vmem %s0, %s145
        %s147 = sadd.s32 %s16, %s17
        %s148 = smul.u32 4, %s147
      $region20: #{segmentation_loss.2} parent=15 // pred_fallthru
        _
      // Predicated region
      $region21: #{segmentation_loss.2} parent=15 // pred_check
        %p149 = pneg %p81
      $region22: #{segmentation_loss.2} parent=15 // pred_check_branch
        %151 = sbr.rel (%p149) target = $region24
      $region23: #{segmentation_loss.2} parent=15 // pred_region
        %s152 = sadd.s32 %s16, %s17
        %p153 = scmp.lt.s32.totalorder %s15, 1
        %s154 = scalar_select %p153, %s15, 1
        %p155 = scmp.lt.s32.totalorder %s152, 0
        %s156 = scalar_select %p155, %s152, 0
        %s157 = sadd.s32 %s156, %s154
        %s158 = smul.addr %s157, 8
        %s159 = scalar_lea.vmem %s1, %s158
        %s160 = sadd.s32 %s16, %s17
      $region24: #{segmentation_loss.2} parent=15 // pred_fallthru
        _
    $region16: #{segmentation_loss.2} parent=5 // pred_fallthru
      _
    %p161 = scmp.le.s32.totalorder 1, %s8
    %p162 = scmp.lt.s32.totalorder %s8, 3
    %p163 = pnand %p161, %p162
    %p164 = pneg %p163
    // Predicated region
    $region25: #{segmentation_loss.2} parent=5 // pred_check
      _
    $region26: #{segmentation_loss.2} parent=5 // pred_check_branch
      %166 = sbr.rel (%p163) target = $region28
    $region27: #{segmentation_loss.2} parent=5 // pred_region
      %s167 = ssub.s32 %s8, 1
      %s168 = sadd.s32 %s19, %s20
      %s169 = smul.u32 4, %s168
      %p170 = scmp.lt.s32.totalorder %s18, 1
      %s171 = scalar_select %p170, %s18, 1
      %p172 = scmp.lt.s32.totalorder %s169, 3
      %s173 = scalar_select %p172, %s169, 3
      %s174 = smul.addr %s171, 12
      %s175 = sadd.s32 %s173, %s174
      %s176 = smul.addr %s175, 8
      %s177 = scalar_lea.vmem %s0, %s176
      %p178 = pneg %p57
      %p179 = pneg %p54
      %s180 = sadd.s32 %s19, %s20
      %p181 = scmp.lt.s32.totalorder %s18, 1
      %s182 = scalar_select %p181, %s18, 1
      %p183 = scmp.lt.s32.totalorder %s180, 0
      %s184 = scalar_select %p183, %s180, 0
      %s185 = sadd.s32 %s184, %s182
      %s186 = smul.addr %s185, 8
      %s187 = scalar_lea.vmem %s1, %s186
      %p188 = pneg %p87
      %p189 = pneg %p84
      %p190 = pneg %p115
      %p191 = pneg %p112
      %p192 = scmp.lt.s32.totalorder %s18, 1
      %s193 = scalar_select %p192, %s18, 1
      %p194 = scmp.lt.s32.totalorder %s19, 0
      %s195 = scalar_select %p194, %s19, 0
      %s196 = smul.addr %s195, 2
      %s197 = smul.addr %s193, 2
      %s198 = sadd.s32 %s196, %s197
      %s199 = smul.addr %s198, 8
      %s200 = scalar_lea.vmem %s2, %s199
      %s201 = sadd.s32 %s19, %s20
      %s202 = smul.u32 4, %s201
      %p203 = scmp.lt.s32.totalorder %s18, 1
      %s204 = scalar_select %p203, %s18, 1
      %p205 = scmp.lt.s32.totalorder %s202, 3
      %s206 = scalar_select %p205, %s202, 3
      %s207 = smul.addr %s204, 12
      %s208 = sadd.s32 %s206, %s207
      %s209 = smul.addr %s208, 8
      %s210 = scalar_lea.vmem %s0, %s209
      %s211 = sadd.s32 %s19, %s20
      %s212 = smul.u32 4, %s211
      %s213 = sadd.s32 %s19, %s20
      %p214 = scmp.lt.s32.totalorder %s18, 1
      %s215 = scalar_select %p214, %s18, 1
      %p216 = scmp.lt.s32.totalorder %s213, 0
      %s217 = scalar_select %p216, %s213, 0
      %s218 = sadd.s32 %s217, %s215
      %s219 = smul.addr %s218, 8
      %s220 = scalar_lea.vmem %s1, %s219
      %s221 = sadd.s32 %s19, %s20
      %p222 = scmp.lt.s32.totalorder %s18, 1
      %s223 = scalar_select %p222, %s18, 1
      %p224 = scmp.lt.s32.totalorder %s19, 0
      %s225 = scalar_select %p224, %s19, 0
      %s226 = smul.addr %s225, 2
      %s227 = smul.addr %s223, 2
      %s228 = sadd.s32 %s226, %s227
      %s229 = smul.addr %s228, 8
      %s230 = scalar_lea.vmem %s2, %s229
      %p231 = scmp.eq.s32.totalorder %s20, 0
      // Predicated region
      $region29: #{segmentation_loss.2} parent=27 // pred_check
        %p232 = pneg %p231
      $region30: #{segmentation_loss.2} parent=27 // pred_check_branch
        %234 = sbr.rel (%p232) target = $region32
      $region31: #{segmentation_loss.2} parent=27 // pred_region
        %235 = vst [vmem:[%s230] sm:$0xff] 0.0
        %236 = vst [vmem:[%s230 + $0x8] sm:$0xff] 0.0
      $region32: #{segmentation_loss.2} parent=27 // pred_fallthru
        _
      %v237 = vld [vmem:[%s210] sm:$0xff]
      %v238 = vld [vmem:[%s210 + $0x8] sm:$0xff]
      %v239 = vld [vmem:[%s210 + $0x10] sm:$0xff]
      %v240 = vld [vmem:[%s210 + $0x18] sm:$0xff]
      %v241 = vld [vmem:[%s210 + $0x20] sm:$0xff]
      %v242 = vld [vmem:[%s210 + $0x28] sm:$0xff]
      %v243 = vld [vmem:[%s210 + $0x30] sm:$0xff]
      %v244 = vld [vmem:[%s210 + $0x38] sm:$0xff]
      %v245 = vld [vmem:[%s210 + $0x40] sm:$0xff]
      %v246 = vld [vmem:[%s210 + $0x48] sm:$0xff]
      %v247 = vld [vmem:[%s210 + $0x50] sm:$0xff]
      %v248 = vld [vmem:[%s210 + $0x58] sm:$0xff]
      %v249 = vld [vmem:[%s220] sm:$0xff]
      %v250 = vunpack.c.0.s8 %v249
      %v251 = vunpack.c.1.s8 %v249
      %v252 = vunpack.c.2.s8 %v249
      %v253 = vunpack.c.3.s8 %v249
      %vm254 = vcmp.ge.s32.totalorder %v250, 0
      %vm255 = vcmp.ge.s32.totalorder %v251, 0
      %vm256 = vcmp.ge.s32.totalorder %v252, 0
      %vm257 = vcmp.ge.s32.totalorder %v253, 0
      %v258 = vsel %vm254, 1, 0
      %v259 = vsel %vm255, 1, 0
      %v260 = vsel %vm256, 1, 0
      %v261 = vsel %vm257, 1, 0
      %v262 = vcvt.s32.f32 %v258
      %v263 = vcvt.s32.f32 %v259
      %v264 = vcvt.s32.f32 %v260
      %v265 = vcvt.s32.f32 %v261
      %vm266 = vcmp.gt.s32.totalorder %v250, 2
      %vm267 = vcmp.gt.s32.totalorder %v251, 2
      %vm268 = vcmp.gt.s32.totalorder %v252, 2
      %vm269 = vcmp.gt.s32.totalorder %v253, 2
      %v270 = vsel %vm266, 1, 0
      %v271 = vsel %vm267, 1, 0
      %v272 = vsel %vm268, 1, 0
      %v273 = vsel %vm269, 1, 0
      %v274 = vcvt.s32.f32 %v270
      %v275 = vcvt.s32.f32 %v271
      %v276 = vcvt.s32.f32 %v272
      %v277 = vcvt.s32.f32 %v273
      %v278 = vsub.f32 %v262, %v274
      %v279 = vsub.f32 %v263, %v275
      %v280 = vsub.f32 %v264, %v276
      %v281 = vsub.f32 %v265, %v277
      %v282 = vsub.s32 %v250, 3
      %v283 = vsub.s32 %v251, 3
      %v284 = vsub.s32 %v252, 3
      %v285 = vsub.s32 %v253, 3
      %v286 = vsel %vm266, %v282, %v250
      %v287 = vsel %vm267, %v283, %v251
      %v288 = vsel %vm268, %v284, %v252
      %v289 = vsel %vm269, %v285, %v253
      %vm290 = vcmp.eq.s32.totalorder %v286, 0
      %vm291 = vcmp.eq.s32.totalorder %v287, 0
      %vm292 = vcmp.eq.s32.totalorder %v288, 0
      %vm293 = vcmp.eq.s32.totalorder %v289, 0
      %v294 = vsel %vm290, %v237, 0.0
      %v295 = vsel %vm291, %v238, 0.0
      %v296 = vsel %vm292, %v239, 0.0
      %v297 = vsel %vm293, %v240, 0.0
      %v298 = vsub.f32 0.0, %v294
      %v299 = vsub.f32 0.0, %v295
      %v300 = vsub.f32 0.0, %v296
      %v301 = vsub.f32 0.0, %v297
      %vm302 = vcmp.eq.s32.totalorder %v286, 1
      %vm303 = vcmp.eq.s32.totalorder %v287, 1
      %vm304 = vcmp.eq.s32.totalorder %v288, 1
      %vm305 = vcmp.eq.s32.totalorder %v289, 1
      %v306 = vsel %vm302, %v241, 0.0
      %v307 = vsel %vm303, %v242, 0.0
      %v308 = vsel %vm304, %v243, 0.0
      %v309 = vsel %vm305, %v244, 0.0
      %v310 = vsub.f32 %v298, %v306
      %v311 = vsub.f32 %v299, %v307
      %v312 = vsub.f32 %v300, %v308
      %v313 = vsub.f32 %v301, %v309
      %vm314 = vcmp.eq.s32.totalorder %v286, 2
      %vm315 = vcmp.eq.s32.totalorder %v287, 2
      %vm316 = vcmp.eq.s32.totalorder %v288, 2
      %vm317 = vcmp.eq.s32.totalorder %v289, 2
      %v318 = vsel %vm314, %v245, 0.0
      %v319 = vsel %vm315, %v246, 0.0
      %v320 = vsel %vm316, %v247, 0.0
      %v321 = vsel %vm317, %v248, 0.0
      %v322 = vsub.f32 %v310, %v318
      %v323 = vsub.f32 %v311, %v319
      %v324 = vsub.f32 %v312, %v320
      %v325 = vsub.f32 %v313, %v321
      %v326 = vmul.f32 %v245, 1.442695
      %v327 = vpow.pop %v326
      %v328 = vmul.f32 %v246, 1.442695
      %v329 = vpow.pop %v328
      %v330 = vmul.f32 %v247, 1.442695
      %v331 = vpow.pop %v330
      %v332 = vmul.f32 %v248, 1.442695
      %v333 = vpow.pop %v332
      %v334 = vsel %vm314, 1, 0
      %v335 = vsel %vm315, 1, 0
      %v336 = vsel %vm316, 1, 0
      %v337 = vsel %vm317, 1, 0
      %v338 = vcvt.s32.f32 %v334
      %v339 = vcvt.s32.f32 %v335
      %v340 = vcvt.s32.f32 %v336
      %v341 = vcvt.s32.f32 %v337
      %v342 = vmul.f32 %v338, %v278
      %v343 = vmul.f32 %v339, %v279
      %v344 = vmul.f32 %v340, %v280
      %v345 = vmul.f32 %v341, %v281
      %v346 = vmul.f32 %v338, %v274
      %v347 = vmul.f32 %v339, %v275
      %v348 = vmul.f32 %v340, %v276
      %v349 = vmul.f32 %v341, %v277
      %v350 = vmul.f32 %v274, 10.0
      %v351 = vmul.f32 %v275, 10.0
      %v352 = vmul.f32 %v276, 10.0
      %v353 = vmul.f32 %v277, 10.0
      %v354 = vadd.f32 %v278, %v350
      %v355 = vadd.f32 %v279, %v351
      %v356 = vadd.f32 %v280, %v352
      %v357 = vadd.f32 %v281, %v353
      %v358 = vmul.f32 %v327, %v327
      %v359 = vmul.f32 %v329, %v329
      %v360 = vmul.f32 %v331, %v331
      %v361 = vmul.f32 %v333, %v333
      %v362 = vadd.f32 %v278, %v279
      %v363 = vadd.f32 %v362, %v280
      %v364 = vadd.f32 %v363, %v281
      %v365 = vrot.slane %v364, 4
      %v366 = vadd.f32 %v364, %v365
      %v367 = vrot.slane %v366, 2
      %v368 = vadd.f32 %v366, %v367
      %v369 = vrot.slane %v368, 1
      %v370 = vadd.f32 %v368, %v369
      %v371 = vadd.f32 %v274, %v275
      %v372 = vadd.f32 %v371, %v276
      %v373 = vadd.f32 %v372, %v277
      %v374 = vrot.slane %v373, 4
      %v375 = vadd.f32 %v373, %v374
      %v376 = vrot.slane %v375, 2
      %v377 = vadd.f32 %v375, %v376
      %v378 = vrot.slane %v377, 1
      %v379 = vadd.f32 %v377, %v378
      %v380 = vmul.f32 %v354, %v322
      %v381 = vmul.f32 %v355, %v323
      %v382 = vmul.f32 %v356, %v324
      %v383 = vmul.f32 %v357, %v325
      %v384 = vadd.f32 %v380, %v381
      %v385 = vadd.f32 %v384, %v382
      %v386 = vadd.f32 %v385, %v383
      %v387 = vrot.slane %v386, 4
      %v388 = vadd.f32 %v386, %v387
      %v389 = vrot.slane %v388, 2
      %v390 = vadd.f32 %v388, %v389
      %v391 = vrot.slane %v390, 1
      %v392 = vadd.f32 %v390, %v391
      %v393 = vmul.f32 %v327, %v342
      %v394 = vmul.f32 %v329, %v343
      %v395 = vmul.f32 %v331, %v344
      %v396 = vmul.f32 %v333, %v345
      %v397 = vadd.f32 %v393, %v394
      %v398 = vadd.f32 %v397, %v395
      %v399 = vadd.f32 %v398, %v396
      %v400 = vrot.slane %v399, 4
      %v401 = vadd.f32 %v399, %v400
      %v402 = vrot.slane %v401, 2
      %v403 = vadd.f32 %v401, %v402
      %v404 = vrot.slane %v403, 1
      %v405 = vadd.f32 %v403, %v404
      %v406 = vmul.f32 %v278, %v358
      %v407 = vmul.f32 %v279, %v359
      %v408 = vmul.f32 %v280, %v360
      %v409 = vmul.f32 %v281, %v361
      %v410 = vadd.f32 %v406, %v407
      %v411 = vadd.f32 %v410, %v408
      %v412 = vadd.f32 %v411, %v409
      %v413 = vrot.slane %v412, 4
      %v414 = vadd.f32 %v412, %v413
      %v415 = vrot.slane %v414, 2
      %v416 = vadd.f32 %v414, %v415
      %v417 = vrot.slane %v416, 1
      %v418 = vadd.f32 %v416, %v417
      %v419 = vadd.f32 %v342, %v343
      %v420 = vadd.f32 %v419, %v344
      %v421 = vadd.f32 %v420, %v345
      %v422 = vrot.slane %v421, 4
      %v423 = vadd.f32 %v421, %v422
      %v424 = vrot.slane %v423, 2
      %v425 = vadd.f32 %v423, %v424
      %v426 = vrot.slane %v425, 1
      %v427 = vadd.f32 %v425, %v426
      %v428 = vmul.f32 %v327, %v346
      %v429 = vmul.f32 %v329, %v347
      %v430 = vmul.f32 %v331, %v348
      %v431 = vmul.f32 %v333, %v349
      %v432 = vadd.f32 %v428, %v429
      %v433 = vadd.f32 %v432, %v430
      %v434 = vadd.f32 %v433, %v431
      %v435 = vrot.slane %v434, 4
      %v436 = vadd.f32 %v434, %v435
      %v437 = vrot.slane %v436, 2
      %v438 = vadd.f32 %v436, %v437
      %v439 = vrot.slane %v438, 1
      %v440 = vadd.f32 %v438, %v439
      %v441 = vmul.f32 %v274, %v358
      %v442 = vmul.f32 %v275, %v359
      %v443 = vmul.f32 %v276, %v360
      %v444 = vmul.f32 %v277, %v361
      %v445 = vadd.f32 %v441, %v442
      %v446 = vadd.f32 %v445, %v443
      %v447 = vadd.f32 %v446, %v444
      %v448 = vrot.slane %v447, 4
      %v449 = vadd.f32 %v447, %v448
      %v450 = vrot.slane %v449, 2
      %v451 = vadd.f32 %v449, %v450
      %v452 = vrot.slane %v451, 1
      %v453 = vadd.f32 %v451, %v452
      %v454 = vadd.f32 %v346, %v347
      %v455 = vadd.f32 %v454, %v348
      %v456 = vadd.f32 %v455, %v349
      %v457 = vrot.slane %v456, 4
      %v458 = vadd.f32 %v456, %v457
      %v459 = vrot.slane %v458, 2
      %v460 = vadd.f32 %v458, %v459
      %v461 = vrot.slane %v460, 1
      %v462 = vadd.f32 %v460, %v461
      %v463 = vld [vmem:[%s230] sm:$0xff]
      %v464 = vld [vmem:[%s230 + $0x8] sm:$0xff]
      %vm465 = vcmask 1040384
      %v466 = vsel %vm465, %v370, %v379
      %vm467 = vcmask 1041408
      %v468 = vsel %vm467, %v466, %v392
      %vm469 = vcmask 1042432
      %v470 = vsel %vm469, %v468, %v405
      %vm471 = vcmask 1043456
      %v472 = vsel %vm471, %v470, %v418
      %vm473 = vcmask 1044480
      %v474 = vsel %vm473, %v472, %v427
      %vm475 = vcmask 1045504
      %v476 = vsel %vm475, %v474, %v440
      %vm477 = vcmask 1046528
      %v478 = vsel %vm477, %v476, %v453
      %v479 = vsel %vm465, %v462, 0.0
      %v480 = vsel %vm467, %v479, 0.0
      %v481 = vsel %vm469, %v480, 0.0
      %v482 = vsel %vm471, %v481, 0.0
      %v483 = vsel %vm473, %v482, 0.0
      %v484 = vsel %vm475, %v483, 0.0
      %v485 = vsel %vm477, %v484, 0.0
      %v486 = vadd.f32 %v463, %v478
      %v487 = vadd.f32 %v464, %v485
      %488 = vst [vmem:[%s230] sm:$0xff] %v486
      %489 = vst [vmem:[%s230 + $0x8] sm:$0xff] %v487
      %p490 = scmp.lt.s32.totalorder %s18, 1
      %s491 = scalar_select %p490, %s18, 1
      %p492 = scmp.lt.s32.totalorder %s19, 0
      %s493 = scalar_select %p492, %s19, 0
      %s494 = smul.addr %s493, 2
      %s495 = smul.addr %s491, 2
      %s496 = sadd.s32 %s494, %s495
      %s497 = smul.addr %s496, 8
      %s498 = scalar_lea.vmem %s2, %s497
      // Predicated region
      $region33: #{segmentation_loss.2} parent=27 // pred_check
        %p499 = pneg %p112
      $region34: #{segmentation_loss.2} parent=27 // pred_check_branch
        %501 = sbr.rel (%p499) target = $region36
      $region35: #{segmentation_loss.2} parent=27 // pred_region
        _
      $region36: #{segmentation_loss.2} parent=27 // pred_fallthru
        _
    $region28: #{segmentation_loss.2} parent=5 // pred_fallthru
      _
    %p502 = scmp.le.s32.totalorder 2, %s8
    // Predicated region
    $region37: #{segmentation_loss.2} parent=5 // pred_check
      %p503 = pneg %p502
    $region38: #{segmentation_loss.2} parent=5 // pred_check_branch
      %505 = sbr.rel (%p503) target = $region40
    $region39: #{segmentation_loss.2} parent=5 // pred_region
      %s506 = ssub.s32 %s8, 2
      // Predicated region
      $region41: #{segmentation_loss.2} parent=39 // pred_check
        %p507 = pneg %p118
      $region42: #{segmentation_loss.2} parent=39 // pred_check_branch
        %509 = sbr.rel (%p507) target = $region44
      $region43: #{segmentation_loss.2} parent=39 // pred_region
        %p510 = scmp.lt.s32.totalorder %s21, 1
        %s511 = scalar_select %p510, %s21, 1
        %p512 = scmp.lt.s32.totalorder %s22, 0
        %s513 = scalar_select %p512, %s22, 0
        %s514 = smul.addr %s513, 2
        %s515 = smul.addr %s511, 2
        %s516 = sadd.s32 %s514, %s515
        %s517 = smul.addr %s516, 8
        %s518 = scalar_lea.vmem %s2, %s517
      $region44: #{segmentation_loss.2} parent=39 // pred_fallthru
        _
    $region40: #{segmentation_loss.2} parent=5 // pred_fallthru
      _
  $region6: #{segmentation_loss.2} parent=0 // loop_footer
    %s12 = sadd.s32 1, %s8
  $region7: #{segmentation_loss.2} parent=0 // loop_footer_branch
    %7 = sbr.rel target = $region3
  $region8: #{segmentation_loss.2} parent=0 // loop_exit
    _

// kernel: segmentation_loss.3
$region0: #{segmentation_loss.3}
  #allocation0 [shape = 'u32[]', space=smem, size = 0x4, offset = 0x4, fixed_abs, tag = 'smem constant byte address 0x4 - core index']
  #allocation1 [shape = 'u32[144,128]{1,0:T(1,128)}', space=vmem, size = 0x12000, scoped, tag = 'internal scratch']
  %s0 = inlined_call_operand.vmem [shape: f32[2,3,8,16,16], index: 0, kind: input, shape index: {}]
  %s1 = inlined_call_operand.vmem [shape: f32[16,16], index: 1, kind: input, shape index: {}, may-alias: {1,2}]
  %s2 = inlined_call_operand.vmem [shape: f32[16,16], index: 2, kind: input, shape index: {}, may-alias: {1,2}]
  %s3 = inlined_call_operand.vmem [shape: f32[2,8,128], index: 3, kind: output, shape index: {}]
  %s4 = sld [smem:[#allocation0]]
  $region45: #{segmentation_loss.3} parent=0
    _
  %s6 = ssub.s32 1, %s4
  %s7 = scalar_select 0, %s6, %s4
  loop: start=0, step=1, limit=4
  $region2: #{segmentation_loss.3} parent=0 // loop_pre_header
    _
  $region3: #{segmentation_loss.3} parent=0 // loop_header
    %s9 = sphi 0, %s13
    %p10 = scmp.ge.s32.totalorder %s9, 4
    %s19 = sphi 0, %s21
    %s22 = sphi 0, %s19
    %s23 = sphi 0, %s22
    %s39 = sphi 0, %s23
    %s43 = sphi 0, %s43
    %s45 = sphi 0, %s43
    %s46 = sphi 0, %s45
    %s60 = sphi 0, %s46
    %s64 = sphi 0, %s64
    %s66 = sphi 0, %s64
    %s67 = sphi 0, %s66
    %s81 = sphi 0, %s67
    %s87 = sphi 0, %s89
    %s90 = sphi 0, %s87
    %s91 = sphi 0, %s90
    %s107 = sphi 0, %s91
  $region4: #{segmentation_loss.3} parent=0 // loop_header_branch
    %12 = sbr.rel (%p10) target = $region8
  $region5: #{segmentation_loss.3} parent=0 // loop_body
    %s14 = ssub.s32 %s9, 1
    %s15 = ssub.s32 %s9, 2
    %s16 = sadd.s32 %s9, 1
    %s17 = ssub.s32 %s9, %s16
    %p18 = scmp.eq.s32.totalorder %s17, 0
    %s20 = sadd.s32 %s19, 1
    %s21 = scalar_select %p18, %s19, %s20
    %p24 = pneg %p18
    %p25 = scmp.eq.s32.totalorder %s9, 1
    %p26 = por %p24, %p25
    %p27 = scmp.ne.s32.totalorder %s19, %s22
    %p28 = scmp.eq.s32.totalorder %s9, 0
    %p29 = por %p27, %p28
    %p30 = scmp.ne.s32.totalorder %s19, %s22
    %p31 = scmp.eq.s32.totalorder %s14, 1
    %p32 = por %p30, %p31
    %p33 = scmp.ne.s32.totalorder %s22, %s23
    %p34 = scmp.eq.s32.totalorder %s14, 0
    %p35 = por %p33, %p34
    %p36 = scmp.ne.s32.totalorder %s22, %s23
    %p37 = scmp.eq.s32.totalorder %s15, 1
    %p38 = por %p36, %p37
    %p40 = scmp.ne.s32.totalorder %s23, %s39
    %p41 = scmp.eq.s32.totalorder %s15, 0
    %p42 = por %p40, %p41
    %s44 = sadd.s32 %s43, 1
    %p47 = scmp.eq.s32.totalorder %s9, 1
    %p48 = scmp.ne.s32.totalorder %s43, %s45
    %p49 = scmp.eq.s32.totalorder %s9, 0
    %p50 = por %p48, %p49
    %p51 = scmp.ne.s32.totalorder %s43, %s45
    %p52 = scmp.eq.s32.totalorder %s14, 1
    %p53 = por %p51, %p52
    %p54 = scmp.ne.s32.totalorder %s45, %s46
    %p55 = scmp.eq.s32.totalorder %s14, 0
    %p56 = por %p54, %p55
    %p57 = scmp.ne.s32.totalorder %s45, %s46
    %p58 = scmp.eq.s32.totalorder %s15, 1
    %p59 = por %p57, %p58
    %p61 = scmp.ne.s32.totalorder %s46, %s60
    %p62 = scmp.eq.s32.totalorder %s15, 0
    %p63 = por %p61, %p62
    %s65 = sadd.s32 %s64, 1
    %p68 = scmp.eq.s32.totalorder %s9, 1
    %p69 = scmp.ne.s32.totalorder %s64, %s66
    %p70 = scmp.eq.s32.totalorder %s9, 0
    %p71 = por %p69, %p70
    %p72 = scmp.ne.s32.totalorder %s64, %s66
    %p73 = scmp.eq.s32.totalorder %s14, 1
    %p74 = por %p72, %p73
    %p75 = scmp.ne.s32.totalorder %s66, %s67
    %p76 = scmp.eq.s32.totalorder %s14, 0
    %p77 = por %p75, %p76
    %p78 = scmp.ne.s32.totalorder %s66, %s67
    %p79 = scmp.eq.s32.totalorder %s15, 1
    %p80 = por %p78, %p79
    %p82 = scmp.ne.s32.totalorder %s67, %s81
    %p83 = scmp.eq.s32.totalorder %s15, 0
    %p84 = por %p82, %p83
    %s85 = ssub.s32 %s9, %s16
    %p86 = scmp.eq.s32.totalorder %s85, 0
    %s88 = sadd.s32 %s87, 1
    %s89 = scalar_select %p86, %s87, %s88
    %p92 = pneg %p86
    %p93 = scmp.eq.s32.totalorder %s9, 1
    %p94 = por %p92, %p93
    %p95 = scmp.ne.s32.totalorder %s87, %s90
    %p96 = scmp.eq.s32.totalorder %s9, 0
    %p97 = por %p95, %p96
    %p98 = scmp.ne.s32.totalorder %s87, %s90
    %p99 = scmp.eq.s32.totalorder %s14, 1
    %p100 = por %p98, %p99
    %p101 = scmp.ne.s32.totalorder %s90, %s91
    %p102 = scmp.eq.s32.totalorder %s14, 0
    %p103 = por %p101, %p102
    %p104 = scmp.ne.s32.totalorder %s90, %s91
    %p105 = scmp.eq.s32.totalorder %s15, 1
    %p106 = por %p104, %p105
    %p108 = scmp.ne.s32.totalorder %s91, %s107
    %p109 = scmp.eq.s32.totalorder %s15, 0
    %p110 = por %p108, %p109
    %p111 = scmp.le.s32.totalorder 1, %s9
    %p112 = scmp.lt.s32.totalorder %s9, 3
    %p113 = pnand %p111, %p112
    %p114 = pneg %p113
    // Predicated region
    $region9: #{segmentation_loss.3} parent=5 // pred_check
      _
    $region10: #{segmentation_loss.3} parent=5 // pred_check_branch
      %116 = sbr.rel (%p113) target = $region12
    $region11: #{segmentation_loss.3} parent=5 // pred_region
      %s117 = ssub.s32 %s9, 1
      // Predicated region
      $region13: #{segmentation_loss.3} parent=11 // pred_check
        %p118 = pneg %p56
      $region14: #{segmentation_loss.3} parent=11 // pred_check_branch
        %120 = sbr.rel (%p118) target = $region16
      $region15: #{segmentation_loss.3} parent=11 // pred_region
        _
      $region16: #{segmentation_loss.3} parent=11 // pred_fallthru
        _
      // Predicated region
      $region17: #{segmentation_loss.3} parent=11 // pred_check
        %p121 = pneg %p77
      $region18: #{segmentation_loss.3} parent=11 // pred_check_branch
        %123 = sbr.rel (%p121) target = $region20
      $region19: #{segmentation_loss.3} parent=11 // pred_region
        _
      $region20: #{segmentation_loss.3} parent=11 // pred_fallthru
        _
    $region12: #{segmentation_loss.3} parent=5 // pred_fallthru
      _
    %p124 = scmp.lt.s32.totalorder %s9, 2
    // Predicated region
    $region21: #{segmentation_loss.3} parent=5 // pred_check
      %p125 = pneg %p124
    $region22: #{segmentation_loss.3} parent=5 // pred_check_branch
      %127 = sbr.rel (%p125) target = $region24
    $region23: #{segmentation_loss.3} parent=5 // pred_region
      // Predicated region
      $region25: #{segmentation_loss.3} parent=23 // pred_check
        %p128 = pneg %p29
      $region26: #{segmentation_loss.3} parent=23 // pred_check_branch
        %130 = sbr.rel (%p128) target = $region28
      $region27: #{segmentation_loss.3} parent=23 // pred_region
        %p131 = scmp.lt.s32.totalorder %s9, 1
        %s132 = scalar_select %p131, %s9, 1
        %s133 = smul.addr %s132, 48
        %s134 = sadd.s32 32, %s133
        %s135 = smul.addr %s134, 8
        %s136 = scalar_lea.vmem %s0, %s135
      $region28: #{segmentation_loss.3} parent=23 // pred_fallthru
        _
    $region24: #{segmentation_loss.3} parent=5 // pred_fallthru
      _
    %p137 = scmp.le.s32.totalorder 1, %s9
    %p138 = scmp.lt.s32.totalorder %s9, 3
    %p139 = pnand %p137, %p138
    %p140 = pneg %p139
    // Predicated region
    $region29: #{segmentation_loss.3} parent=5 // pred_check
      _
    $region30: #{segmentation_loss.3} parent=5 // pred_check_branch
      %142 = sbr.rel (%p139) target = $region32
    $region31: #{segmentation_loss.3} parent=5 // pred_region
      %s143 = ssub.s32 %s9, 1
      %p144 = scmp.lt.s32.totalorder %s14, 1
      %s145 = scalar_select %p144, %s14, 1
      %s146 = smul.addr %s145, 48
      %s147 = sadd.s32 32, %s146
      %s148 = smul.addr %s147, 8
      %s149 = scalar_lea.vmem %s0, %s148
      %p150 = pneg %p35
      %p151 = pneg %p32
      %p152 = pneg %p56
      %p153 = pneg %p53
      %p154 = pneg %p77
      %p155 = pneg %p74
      %p156 = pneg %p103
      %p157 = pneg %p100
      %p158 = scmp.lt.s32.totalorder %s14, 1
      %s159 = scalar_select %p158, %s14, 1
      %s160 = smul.addr %s159, 8
      %s161 = scalar_lea.vmem %s3, %s160
      %p162 = scmp.lt.s32.totalorder %s14, 1
      %s163 = scalar_select %p162, %s14, 1
      %s164 = smul.addr %s163, 48
      %s165 = sadd.s32 32, %s164
      %s166 = smul.addr %s165, 8
      %s167 = scalar_lea.vmem %s0, %s166
      %p168 = scmp.lt.s32.totalorder %s14, 1
      %s169 = scalar_select %p168, %s14, 1
      %s170 = smul.addr %s169, 8
      %s171 = scalar_lea.vmem %s3, %s170
      %v172 = vld [vmem:[%s167] sm:$0xff]
      %v173 = vld [vmem:[%s167 + $0x8] sm:$0xff]
      %v174 = vld [vmem:[%s167 + $0x10] sm:$0xff]
      %v175 = vld [vmem:[%s167 + $0x18] sm:$0xff]
      %v176 = vld [vmem:[%s167 + $0x20] sm:$0xff]
      %v177 = vld [vmem:[%s167 + $0x28] sm:$0xff]
      %v178 = vld [vmem:[%s167 + $0x30] sm:$0xff]
      %v179 = vld [vmem:[%s167 + $0x38] sm:$0xff]
      %v180 = vld [vmem:[%s167 + $0x40] sm:$0xff]
      %v181 = vld [vmem:[%s167 + $0x48] sm:$0xff]
      %v182 = vld [vmem:[%s167 + $0x50] sm:$0xff]
      %v183 = vld [vmem:[%s167 + $0x58] sm:$0xff]
      %v184 = vld [vmem:[%s167 + $0x60] sm:$0xff]
      %v185 = vld [vmem:[%s167 + $0x68] sm:$0xff]
      %v186 = vld [vmem:[%s167 + $0x70] sm:$0xff]
      %v187 = vld [vmem:[%s167 + $0x78] sm:$0xff]
      %v188 = vmul.f32 %v172, 1.442695
      %v189 = vpow.pop %v188
      %v190 = vmul.f32 %v173, 1.442695
      %v191 = vpow.pop %v190
      %v192 = vmul.f32 %v176, 1.442695
      %v193 = vpow.pop %v192
      %v194 = vmul.f32 %v177, 1.442695
      %v195 = vpow.pop %v194
      %v196 = vmul.f32 %v180, 1.442695
      %v197 = vpow.pop %v196
      %v198 = vmul.f32 %v181, 1.442695
      %v199 = vpow.pop %v198
      %v200 = vmul.f32 %v184, 1.442695
      %v201 = vpow.pop %v200
      %v202 = vmul.f32 %v185, 1.442695
      %v203 = vpow.pop %v202
      %v204 = vmul.f32 %v174, 1.442695
      %v205 = vpow.pop %v204
      %v206 = vmul.f32 %v175, 1.442695
      %v207 = vpow.pop %v206
      %v208 = vmul.f32 %v178, 1.442695
      %v209 = vpow.pop %v208
      %v210 = vmul.f32 %v179, 1.442695
      %v211 = vpow.pop %v210
      %v212 = vmul.f32 %v182, 1.442695
      %v213 = vpow.pop %v212
      %v214 = vmul.f32 %v183, 1.442695
      %v215 = vpow.pop %v214
      %v216 = vmul.f32 %v186, 1.442695
      %v217 = vpow.pop %v216
      %v218 = vmul.f32 %v187, 1.442695
      %v219 = vpow.pop %v218
      %v220 = vmul.f32 %v189, 0.45186275
      %v221 = vmul.f32 %v191, 0.45186275
      %v222 = vmul.f32 %v205, 0.27406862
      %v223 = vmul.f32 %v207, 0.27406862
      %v224 = vadd.f32 %v220, %v222
      %v225 = vadd.f32 %v221, %v223
      %v226 = vmul.f32 %v209, 0.27406862
      %v227 = vmul.f32 %v211, 0.27406862
      %v228 = vmul.f32 %v213, 0.27406862
      %v229 = vmul.f32 %v215, 0.27406862
      %v230 = vmul.f32 %v193, 0.45186275
      %v231 = vmul.f32 %v195, 0.45186275
      %v232 = vmul.f32 %v197, 0.45186275
      %v233 = vmul.f32 %v199, 0.45186275
      %v234 = vmul.f32 %v201, 0.45186275
      %v235 = vmul.f32 %v203, 0.45186275
      %v236 = vadd.f32 %v222, %v230
      %v237 = vadd.f32 %v223, %v231
      %v238 = vadd.f32 %v226, %v232
      %v239 = vadd.f32 %v227, %v233
      %v240 = vadd.f32 %v228, %v234
      %v241 = vadd.f32 %v229, %v235
      %v242 = vmul.f32 %v217, 0.27406862
      %v243 = vmul.f32 %v219, 0.27406862
      %v244 = vadd.f32 %v236, %v226
      %v245 = vadd.f32 %v237, %v227
      %v246 = vadd.f32 %v238, %v228
      %v247 = vadd.f32 %v239, %v229
      %v248 = vadd.f32 %v240, %v242
      %v249 = vadd.f32 %v241, %v243
      %v250 = vld [vmem:[%s1] sm:$0xff]
      %v251 = vld [vmem:[%s1 + $0x8] sm:$0xff]
      %vm252 = vcmask 130048
      %v254 = vsel %vm252, %v224, 0
      %v257 = vsel %vm252, %v225, 0
      %v260 = vsel %vm252, %v244, 0
      %v263 = vsel %vm252, %v245, 0
      %v266 = vsel %vm252, %v246, 0
      %v269 = vsel %vm252, %v247, 0
      %v272 = vsel %vm252, %v248, 0
      %v275 = vsel %vm252, %v249, 0
      %277 = vmatprep.subr.mxu0 0.0
      %278 = vmatpush1.msra.mxu0 0.0
      %279 = vmatprep.subr.mxu0 0.0
      %280 = vmatpush1.msra.mxu0 0.0
      %281 = vmatprep.subr.mxu0 0.0
      %282 = vmatpush1.msra.mxu0 0.0
      %283 = vmatprep.subr.mxu0 0.0
      %284 = vmatpush1.msra.mxu0 0.0
      %285 = vmatprep.subr.mxu0 0.0
      %286 = vmatpush1.msra.mxu0 0.0
      %287 = vmatprep.subr.mxu0 0.0
      %288 = vmatpush1.msra.mxu0 0.0
      %289 = vmatprep.subr.mxu0 0.0
      %290 = vmatpush1.msra.mxu0 0.0
      %291 = vmatprep.subr.mxu0 0.0
      %292 = vmatpush1.msra.mxu0 0.0
      %293 = vmatprep.subr.mxu0 0.0
      %294 = vmatpush1.msra.mxu0 0.0
      %295 = vmatprep.subr.mxu0 0.0
      %296 = vmatpush1.msra.mxu0 0.0
      %297 = vmatprep.subr.mxu0 0.0
      %298 = vmatpush1.msra.mxu0 0.0
      %299 = vmatprep.subr.mxu0 0.0
      %300 = vmatpush1.msra.mxu0 0.0
      %301 = vmatprep.subr.mxu0 0.0
      %302 = vmatpush1.msra.mxu0 0.0
      %303 = vmatprep.subr.mxu0 0.0
      %304 = vmatpush1.msra.mxu0 0.0
      %305 = vmatprep.subr.mxu0 0.0
      %306 = vmatpush1.msra.mxu0 %v251
      %307 = vmatprep.subr.mxu0 0.0
      %308 = vmatpush1.msra.mxu0 %v250
      %309 = vmatprep.subr.mxu0 0.0
      %310 = vmatpush2.msra.mxu0 0.0
      %311 = vmatprep.subr.mxu0 0.0
      %312 = vmatpush2.msra.mxu0 0.0
      %313 = vmatprep.subr.mxu0 0.0
      %314 = vmatpush2.msra.mxu0 0.0
      %315 = vmatprep.subr.mxu0 0.0
      %316 = vmatpush2.msra.mxu0 0.0
      %317 = vmatprep.subr.mxu0 0.0
      %318 = vmatpush2.msra.mxu0 0.0
      %319 = vmatprep.subr.mxu0 0.0
      %320 = vmatpush2.msra.mxu0 0.0
      %321 = vmatprep.subr.mxu0 0.0
      %322 = vmatpush2.msra.mxu0 0.0
      %323 = vmatprep.subr.mxu0 0.0
      %324 = vmatpush2.msra.mxu0 0.0
      %325 = vmatprep.subr.mxu0 0.0
      %326 = vmatpush2.msra.mxu0 0.0
      %327 = vmatprep.subr.mxu0 0.0
      %328 = vmatpush2.msra.mxu0 0.0
      %329 = vmatprep.subr.mxu0 0.0
      %330 = vmatpush2.msra.mxu0 0.0
      %331 = vmatprep.subr.mxu0 0.0
      %332 = vmatpush2.msra.mxu0 0.0
      %333 = vmatprep.subr.mxu0 0.0
      %334 = vmatpush2.msra.mxu0 0.0
      %335 = vmatprep.subr.mxu0 0.0
      %336 = vmatpush2.msra.mxu0 0.0
      %337 = vmatprep.subr.mxu0 0.0
      %338 = vmatpush2.msra.mxu0 0.0
      %339 = vmatprep.subr.mxu0 0.0
      %340 = vmatpush2.msra.mxu0 0.0
      %341 = vmatprep.mubr.f32.mxu0 0.0
      %342 = vmatmul.mubr.f32.gmra.mxu0 %v254
      %v343 = vpop.f32.mrf.mxu0
      %v344 = vadd.f32 0.0, %v343
      %v345 = vpop.f32.mrf.mxu0
      %346 = vmatprep.mubr.f32.mxu0 0.0
      %347 = vmatmul.mubr.f32.gmra.mxu0 %v257
      %v348 = vpop.f32.mrf.mxu0
      %v349 = vadd.f32 0.0, %v348
      %v350 = vpop.f32.mrf.mxu0
      %351 = vmatprep.mubr.f32.mxu0 0.0
      %352 = vmatmul.mubr.f32.gmra.mxu0 %v260
      %v353 = vpop.f32.mrf.mxu0
      %v354 = vadd.f32 0.0, %v353
      %v355 = vpop.f32.mrf.mxu0
      %356 = vmatprep.mubr.f32.mxu0 0.0
      %357 = vmatmul.mubr.f32.gmra.mxu0 %v263
      %v358 = vpop.f32.mrf.mxu0
      %v359 = vadd.f32 0.0, %v358
      %v360 = vpop.f32.mrf.mxu0
      %361 = vmatprep.mubr.f32.mxu0 0.0
      %362 = vmatmul.mubr.f32.gmra.mxu0 %v266
      %v363 = vpop.f32.mrf.mxu0
      %v364 = vadd.f32 0.0, %v363
      %v365 = vpop.f32.mrf.mxu0
      %366 = vmatprep.mubr.f32.mxu0 0.0
      %367 = vmatmul.mubr.f32.gmra.mxu0 %v269
      %v368 = vpop.f32.mrf.mxu0
      %v369 = vadd.f32 0.0, %v368
      %v370 = vpop.f32.mrf.mxu0
      %371 = vmatprep.mubr.f32.mxu0 0.0
      %372 = vmatmul.mubr.f32.gmra.mxu0 %v272
      %v373 = vpop.f32.mrf.mxu0
      %v374 = vadd.f32 0.0, %v373
      %v375 = vpop.f32.mrf.mxu0
      %376 = vmatprep.mubr.f32.mxu0 0.0
      %377 = vmatmul.mubr.f32.gmra.mxu0 %v275
      %v378 = vpop.f32.mrf.mxu0
      %v379 = vadd.f32 0.0, %v378
      %v380 = vpop.f32.mrf.mxu0
      %381 = vdwg.mxu0
      %382 = vxpose.xlu0.b32.start [1/16] %v344, 128
      %383 = vxpose.xlu0.b32.cont [2/16] %v349, 128
      %384 = vxpose.xlu0.b32.cont [3/16] 0.0, 128
      %385 = vxpose.xlu0.b32.cont [4/16] 0.0, 128
      %386 = vxpose.xlu0.b32.cont [5/16] 0.0, 128
      %387 = vxpose.xlu0.b32.cont [6/16] 0.0, 128
      %388 = vxpose.xlu0.b32.cont [7/16] 0.0, 128
      %389 = vxpose.xlu0.b32.cont [8/16] 0.0, 128
      %390 = vxpose.xlu0.b32.cont [9/16] 0.0, 128
      %391 = vxpose.xlu0.b32.cont [10/16] 0.0, 128
      %392 = vxpose.xlu0.b32.cont [11/16] 0.0, 128
      %393 = vxpose.xlu0.b32.cont [12/16] 0.0, 128
      %394 = vxpose.xlu0.b32.cont [13/16] 0.0, 128
      %395 = vxpose.xlu0.b32.cont [14/16] 0.0, 128
      %396 = vxpose.xlu0.b32.cont [15/16] 0.0, 128
      %397 = vxpose.xlu0.b32.end [16/16] 0.0, 128
      %v398 = vpop.trf.xlu0
      %v399 = vpop.trf.xlu0
      %v400 = vpop.trf.xlu0
      %v401 = vpop.trf.xlu0
      %v402 = vpop.trf.xlu0
      %v403 = vpop.trf.xlu0
      %v404 = vpop.trf.xlu0
      %v405 = vpop.trf.xlu0
      %v406 = vpop.trf.xlu0
      %v407 = vpop.trf.xlu0
      %v408 = vpop.trf.xlu0
      %v409 = vpop.trf.xlu0
      %v410 = vpop.trf.xlu0
      %v411 = vpop.trf.xlu0
      %v412 = vpop.trf.xlu0
      %v413 = vpop.trf.xlu0
      %414 = vxpose.xlu0.b32.start [1/16] %v354, 128
      %415 = vxpose.xlu0.b32.cont [2/16] %v359, 128
      %416 = vxpose.xlu0.b32.cont [3/16] 0.0, 128
      %417 = vxpose.xlu0.b32.cont [4/16] 0.0, 128
      %418 = vxpose.xlu0.b32.cont [5/16] 0.0, 128
      %419 = vxpose.xlu0.b32.cont [6/16] 0.0, 128
      %420 = vxpose.xlu0.b32.cont [7/16] 0.0, 128
      %421 = vxpose.xlu0.b32.cont [8/16] 0.0, 128
      %422 = vxpose.xlu0.b32.cont [9/16] 0.0, 128
      %423 = vxpose.xlu0.b32.cont [10/16] 0.0, 128
      %424 = vxpose.xlu0.b32.cont [11/16] 0.0, 128
      %425 = vxpose.xlu0.b32.cont [12/16] 0.0, 128
      %426 = vxpose.xlu0.b32.cont [13/16] 0.0, 128
      %427 = vxpose.xlu0.b32.cont [14/16] 0.0, 128
      %428 = vxpose.xlu0.b32.cont [15/16] 0.0, 128
      %429 = vxpose.xlu0.b32.end [16/16] 0.0, 128
      %v430 = vpop.trf.xlu0
      %v431 = vpop.trf.xlu0
      %v432 = vpop.trf.xlu0
      %v433 = vpop.trf.xlu0
      %v434 = vpop.trf.xlu0
      %v435 = vpop.trf.xlu0
      %v436 = vpop.trf.xlu0
      %v437 = vpop.trf.xlu0
      %v438 = vpop.trf.xlu0
      %v439 = vpop.trf.xlu0
      %v440 = vpop.trf.xlu0
      %v441 = vpop.trf.xlu0
      %v442 = vpop.trf.xlu0
      %v443 = vpop.trf.xlu0
      %v444 = vpop.trf.xlu0
      %v445 = vpop.trf.xlu0
      %446 = vxpose.xlu0.b32.start [1/16] %v364, 128
      %447 = vxpose.xlu0.b32.cont [2/16] %v369, 128
      %448 = vxpose.xlu0.b32.cont [3/16] 0.0, 128
      %449 = vxpose.xlu0.b32.cont [4/16] 0.0, 128
      %450 = vxpose.xlu0.b32.cont [5/16] 0.0, 128
      %451 = vxpose.xlu0.b32.cont [6/16] 0.0, 128
      %452 = vxpose.xlu0.b32.cont [7/16] 0.0, 128
      %453 = vxpose.xlu0.b32.cont [8/16] 0.0, 128
      %454 = vxpose.xlu0.b32.cont [9/16] 0.0, 128
      %455 = vxpose.xlu0.b32.cont [10/16] 0.0, 128
      %456 = vxpose.xlu0.b32.cont [11/16] 0.0, 128
      %457 = vxpose.xlu0.b32.cont [12/16] 0.0, 128
      %458 = vxpose.xlu0.b32.cont [13/16] 0.0, 128
      %459 = vxpose.xlu0.b32.cont [14/16] 0.0, 128
      %460 = vxpose.xlu0.b32.cont [15/16] 0.0, 128
      %461 = vxpose.xlu0.b32.end [16/16] 0.0, 128
      %v462 = vpop.trf.xlu0
      %v463 = vpop.trf.xlu0
      %v464 = vpop.trf.xlu0
      %v465 = vpop.trf.xlu0
      %v466 = vpop.trf.xlu0
      %v467 = vpop.trf.xlu0
      %v468 = vpop.trf.xlu0
      %v469 = vpop.trf.xlu0
      %v470 = vpop.trf.xlu0
      %v471 = vpop.trf.xlu0
      %v472 = vpop.trf.xlu0
      %v473 = vpop.trf.xlu0
      %v474 = vpop.trf.xlu0
      %v475 = vpop.trf.xlu0
      %v476 = vpop.trf.xlu0
      %v477 = vpop.trf.xlu0
      %478 = vxpose.xlu0.b32.start [1/16] %v374, 128
      %479 = vxpose.xlu0.b32.cont [2/16] %v379, 128
      %480 = vxpose.xlu0.b32.cont [3/16] 0.0, 128
      %481 = vxpose.xlu0.b32.cont [4/16] 0.0, 128
      %482 = vxpose.xlu0.b32.cont [5/16] 0.0, 128
      %483 = vxpose.xlu0.b32.cont [6/16] 0.0, 128
      %484 = vxpose.xlu0.b32.cont [7/16] 0.0, 128
      %485 = vxpose.xlu0.b32.cont [8/16] 0.0, 128
      %486 = vxpose.xlu0.b32.cont [9/16] 0.0, 128
      %487 = vxpose.xlu0.b32.cont [10/16] 0.0, 128
      %488 = vxpose.xlu0.b32.cont [11/16] 0.0, 128
      %489 = vxpose.xlu0.b32.cont [12/16] 0.0, 128
      %490 = vxpose.xlu0.b32.cont [13/16] 0.0, 128
      %491 = vxpose.xlu0.b32.cont [14/16] 0.0, 128
      %492 = vxpose.xlu0.b32.cont [15/16] 0.0, 128
      %493 = vxpose.xlu0.b32.end [16/16] 0.0, 128
      %v494 = vpop.trf.xlu0
      %v495 = vpop.trf.xlu0
      %v496 = vpop.trf.xlu0
      %v497 = vpop.trf.xlu0
      %v498 = vpop.trf.xlu0
      %v499 = vpop.trf.xlu0
      %v500 = vpop.trf.xlu0
      %v501 = vpop.trf.xlu0
      %v502 = vpop.trf.xlu0
      %v503 = vpop.trf.xlu0
      %v504 = vpop.trf.xlu0
      %v505 = vpop.trf.xlu0
      %v506 = vpop.trf.xlu0
      %v507 = vpop.trf.xlu0
      %v508 = vpop.trf.xlu0
      %v509 = vpop.trf.xlu0
      %v510 = vld [vmem:[%s2] sm:$0xff]
      %v511 = vld [vmem:[%s2 + $0x8] sm:$0xff]
      %v513 = vsel %vm252, %v398, 0
      %v516 = vsel %vm252, %v399, 0
      %v519 = vsel %vm252, %v430, 0
      %v522 = vsel %vm252, %v431, 0
      %v525 = vsel %vm252, %v462, 0
      %v528 = vsel %vm252, %v463, 0
      %v531 = vsel %vm252, %v494, 0
      %v534 = vsel %vm252, %v495, 0
      %536 = vmatprep.subr.mxu0 0.0
      %537 = vmatpush1.msra.mxu0 0.0
      %538 = vmatprep.subr.mxu0 0.0
      %539 = vmatpush1.msra.mxu0 0.0
      %540 = vmatprep.subr.mxu0 0.0
      %541 = vmatpush1.msra.mxu0 0.0
      %542 = vmatprep.subr.mxu0 0.0
      %543 = vmatpush1.msra.mxu0 0.0
      %544 = vmatprep.subr.mxu0 0.0
      %545 = vmatpush1.msra.mxu0 0.0
      %546 = vmatprep.subr.mxu0 0.0
      %547 = vmatpush1.msra.mxu0 0.0
      %548 = vmatprep.subr.mxu0 0.0
      %549 = vmatpush1.msra.mxu0 0.0
      %550 = vmatprep.subr.mxu0 0.0
      %551 = vmatpush1.msra.mxu0 0.0
      %552 = vmatprep.subr.mxu0 0.0
      %553 = vmatpush1.msra.mxu0 0.0
      %554 = vmatprep.subr.mxu0 0.0
      %555 = vmatpush1.msra.mxu0 0.0
      %556 = vmatprep.subr.mxu0 0.0
      %557 = vmatpush1.msra.mxu0 0.0
      %558 = vmatprep.subr.mxu0 0.0
      %559 = vmatpush1.msra.mxu0 0.0
      %560 = vmatprep.subr.mxu0 0.0
      %561 = vmatpush1.msra.mxu0 0.0
      %562 = vmatprep.subr.mxu0 0.0
      %563 = vmatpush1.msra.mxu0 0.0
      %564 = vmatprep.subr.mxu0 0.0
      %565 = vmatpush1.msra.mxu0 %v511
      %566 = vmatprep.subr.mxu0 0.0
      %567 = vmatpush1.msra.mxu0 %v510
      %568 = vmatprep.subr.mxu0 0.0
      %569 = vmatpush2.msra.mxu0 0.0
      %570 = vmatprep.subr.mxu0 0.0
      %571 = vmatpush2.msra.mxu0 0.0
      %572 = vmatprep.subr.mxu0 0.0
      %573 = vmatpush2.msra.mxu0 0.0
      %574 = vmatprep.subr.mxu0 0.0
      %575 = vmatpush2.msra.mxu0 0.0
      %576 = vmatprep.subr.mxu0 0.0
      %577 = vmatpush2.msra.mxu0 0.0
      %578 = vmatprep.subr.mxu0 0.0
      %579 = vmatpush2.msra.mxu0 0.0
      %580 = vmatprep.subr.mxu0 0.0
      %581 = vmatpush2.msra.mxu0 0.0
      %582 = vmatprep.subr.mxu0 0.0
      %583 = vmatpush2.msra.mxu0 0.0
      %584 = vmatprep.subr.mxu0 0.0
      %585 = vmatpush2.msra.mxu0 0.0
      %586 = vmatprep.subr.mxu0 0.0
      %587 = vmatpush2.msra.mxu0 0.0
      %588 = vmatprep.subr.mxu0 0.0
      %589 = vmatpush2.msra.mxu0 0.0
      %590 = vmatprep.subr.mxu0 0.0
      %591 = vmatpush2.msra.mxu0 0.0
      %592 = vmatprep.subr.mxu0 0.0
      %593 = vmatpush2.msra.mxu0 0.0
      %594 = vmatprep.subr.mxu0 0.0
      %595 = vmatpush2.msra.mxu0 0.0
      %596 = vmatprep.subr.mxu0 0.0
      %597 = vmatpush2.msra.mxu0 0.0
      %598 = vmatprep.subr.mxu0 0.0
      %599 = vmatpush2.msra.mxu0 0.0
      %600 = vmatprep.mubr.f32.mxu0 0.0
      %601 = vmatmul.mubr.f32.gmra.mxu0 %v513
      %v602 = vpop.f32.mrf.mxu0
      %v603 = vadd.f32 0.0, %v602
      %v604 = vpop.f32.mrf.mxu0
      %605 = vmatprep.mubr.f32.mxu0 0.0
      %606 = vmatmul.mubr.f32.gmra.mxu0 %v516
      %v607 = vpop.f32.mrf.mxu0
      %v608 = vadd.f32 0.0, %v607
      %v609 = vpop.f32.mrf.mxu0
      %610 = vmatprep.mubr.f32.mxu0 0.0
      %611 = vmatmul.mubr.f32.gmra.mxu0 %v519
      %v612 = vpop.f32.mrf.mxu0
      %v613 = vadd.f32 0.0, %v612
      %v614 = vpop.f32.mrf.mxu0
      %615 = vmatprep.mubr.f32.mxu0 0.0
      %616 = vmatmul.mubr.f32.gmra.mxu0 %v522
      %v617 = vpop.f32.mrf.mxu0
      %v618 = vadd.f32 0.0, %v617
      %v619 = vpop.f32.mrf.mxu0
      %620 = vmatprep.mubr.f32.mxu0 0.0
      %621 = vmatmul.mubr.f32.gmra.mxu0 %v525
      %v622 = vpop.f32.mrf.mxu0
      %v623 = vadd.f32 0.0, %v622
      %v624 = vpop.f32.mrf.mxu0
      %625 = vmatprep.mubr.f32.mxu0 0.0
      %626 = vmatmul.mubr.f32.gmra.mxu0 %v528
      %v627 = vpop.f32.mrf.mxu0
      %v628 = vadd.f32 0.0, %v627
      %v629 = vpop.f32.mrf.mxu0
      %630 = vmatprep.mubr.f32.mxu0 0.0
      %631 = vmatmul.mubr.f32.gmra.mxu0 %v531
      %v632 = vpop.f32.mrf.mxu0
      %v633 = vadd.f32 0.0, %v632
      %v634 = vpop.f32.mrf.mxu0
      %635 = vmatprep.mubr.f32.mxu0 0.0
      %636 = vmatmul.mubr.f32.gmra.mxu0 %v534
      %v637 = vpop.f32.mrf.mxu0
      %v638 = vadd.f32 0.0, %v637
      %v639 = vpop.f32.mrf.mxu0
      %640 = vdwg.mxu0
      %641 = vxpose.xlu0.b32.start [1/16] %v603, 128
      %642 = vxpose.xlu0.b32.cont [2/16] %v608, 128
      %643 = vxpose.xlu0.b32.cont [3/16] 0.0, 128
      %644 = vxpose.xlu0.b32.cont [4/16] 0.0, 128
      %645 = vxpose.xlu0.b32.cont [5/16] 0.0, 128
      %646 = vxpose.xlu0.b32.cont [6/16] 0.0, 128
      %647 = vxpose.xlu0.b32.cont [7/16] 0.0, 128
      %648 = vxpose.xlu0.b32.cont [8/16] 0.0, 128
      %649 = vxpose.xlu0.b32.cont [9/16] 0.0, 128
      %650 = vxpose.xlu0.b32.cont [10/16] 0.0, 128
      %651 = vxpose.xlu0.b32.cont [11/16] 0.0, 128
      %652 = vxpose.xlu0.b32.cont [12/16] 0.0, 128
      %653 = vxpose.xlu0.b32.cont [13/16] 0.0, 128
      %654 = vxpose.xlu0.b32.cont [14/16] 0.0, 128
      %655 = vxpose.xlu0.b32.cont [15/16] 0.0, 128
      %656 = vxpose.xlu0.b32.end [16/16] 0.0, 128
      %v657 = vpop.trf.xlu0
      %v658 = vpop.trf.xlu0
      %v659 = vpop.trf.xlu0
      %v660 = vpop.trf.xlu0
      %v661 = vpop.trf.xlu0
      %v662 = vpop.trf.xlu0
      %v663 = vpop.trf.xlu0
      %v664 = vpop.trf.xlu0
      %v665 = vpop.trf.xlu0
      %v666 = vpop.trf.xlu0
      %v667 = vpop.trf.xlu0
      %v668 = vpop.trf.xlu0
      %v669 = vpop.trf.xlu0
      %v670 = vpop.trf.xlu0
      %v671 = vpop.trf.xlu0
      %v672 = vpop.trf.xlu0
      %673 = vxpose.xlu0.b32.start [1/16] %v613, 128
      %674 = vxpose.xlu0.b32.cont [2/16] %v618, 128
      %675 = vxpose.xlu0.b32.cont [3/16] 0.0, 128
      %676 = vxpose.xlu0.b32.cont [4/16] 0.0, 128
      %677 = vxpose.xlu0.b32.cont [5/16] 0.0, 128
      %678 = vxpose.xlu0.b32.cont [6/16] 0.0, 128
      %679 = vxpose.xlu0.b32.cont [7/16] 0.0, 128
      %680 = vxpose.xlu0.b32.cont [8/16] 0.0, 128
      %681 = vxpose.xlu0.b32.cont [9/16] 0.0, 128
      %682 = vxpose.xlu0.b32.cont [10/16] 0.0, 128
      %683 = vxpose.xlu0.b32.cont [11/16] 0.0, 128
      %684 = vxpose.xlu0.b32.cont [12/16] 0.0, 128
      %685 = vxpose.xlu0.b32.cont [13/16] 0.0, 128
      %686 = vxpose.xlu0.b32.cont [14/16] 0.0, 128
      %687 = vxpose.xlu0.b32.cont [15/16] 0.0, 128
      %688 = vxpose.xlu0.b32.end [16/16] 0.0, 128
      %v689 = vpop.trf.xlu0
      %v690 = vpop.trf.xlu0
      %v691 = vpop.trf.xlu0
      %v692 = vpop.trf.xlu0
      %v693 = vpop.trf.xlu0
      %v694 = vpop.trf.xlu0
      %v695 = vpop.trf.xlu0
      %v696 = vpop.trf.xlu0
      %v697 = vpop.trf.xlu0
      %v698 = vpop.trf.xlu0
      %v699 = vpop.trf.xlu0
      %v700 = vpop.trf.xlu0
      %v701 = vpop.trf.xlu0
      %v702 = vpop.trf.xlu0
      %v703 = vpop.trf.xlu0
      %v704 = vpop.trf.xlu0
      %705 = vxpose.xlu0.b32.start [1/16] %v623, 128
      %706 = vxpose.xlu0.b32.cont [2/16] %v628, 128
      %707 = vxpose.xlu0.b32.cont [3/16] 0.0, 128
      %708 = vxpose.xlu0.b32.cont [4/16] 0.0, 128
      %709 = vxpose.xlu0.b32.cont [5/16] 0.0, 128
      %710 = vxpose.xlu0.b32.cont [6/16] 0.0, 128
      %711 = vxpose.xlu0.b32.cont [7/16] 0.0, 128
      %712 = vxpose.xlu0.b32.cont [8/16] 0.0, 128
      %713 = vxpose.xlu0.b32.cont [9/16] 0.0, 128
      %714 = vxpose.xlu0.b32.cont [10/16] 0.0, 128
      %715 = vxpose.xlu0.b32.cont [11/16] 0.0, 128
      %716 = vxpose.xlu0.b32.cont [12/16] 0.0, 128
      %717 = vxpose.xlu0.b32.cont [13/16] 0.0, 128
      %718 = vxpose.xlu0.b32.cont [14/16] 0.0, 128
      %719 = vxpose.xlu0.b32.cont [15/16] 0.0, 128
      %720 = vxpose.xlu0.b32.end [16/16] 0.0, 128
      %v721 = vpop.trf.xlu0
      %v722 = vpop.trf.xlu0
      %v723 = vpop.trf.xlu0
      %v724 = vpop.trf.xlu0
      %v725 = vpop.trf.xlu0
      %v726 = vpop.trf.xlu0
      %v727 = vpop.trf.xlu0
      %v728 = vpop.trf.xlu0
      %v729 = vpop.trf.xlu0
      %v730 = vpop.trf.xlu0
      %v731 = vpop.trf.xlu0
      %v732 = vpop.trf.xlu0
      %v733 = vpop.trf.xlu0
      %v734 = vpop.trf.xlu0
      %v735 = vpop.trf.xlu0
      %v736 = vpop.trf.xlu0
      %737 = vxpose.xlu0.b32.start [1/16] %v633, 128
      %738 = vxpose.xlu0.b32.cont [2/16] %v638, 128
      %739 = vxpose.xlu0.b32.cont [3/16] 0.0, 128
      %740 = vxpose.xlu0.b32.cont [4/16] 0.0, 128
      %741 = vxpose.xlu0.b32.cont [5/16] 0.0, 128
      %742 = vxpose.xlu0.b32.cont [6/16] 0.0, 128
      %743 = vxpose.xlu0.b32.cont [7/16] 0.0, 128
      %744 = vxpose.xlu0.b32.cont [8/16] 0.0, 128
      %745 = vxpose.xlu0.b32.cont [9/16] 0.0, 128
      %746 = vxpose.xlu0.b32.cont [10/16] 0.0, 128
      %747 = vxpose.xlu0.b32.cont [11/16] 0.0, 128
      %748 = vxpose.xlu0.b32.cont [12/16] 0.0, 128
      %749 = vxpose.xlu0.b32.cont [13/16] 0.0, 128
      %750 = vxpose.xlu0.b32.cont [14/16] 0.0, 128
      %751 = vxpose.xlu0.b32.cont [15/16] 0.0, 128
      %752 = vxpose.xlu0.b32.end [16/16] 0.0, 128
      %v753 = vpop.trf.xlu0
      %v754 = vpop.trf.xlu0
      %v755 = vpop.trf.xlu0
      %v756 = vpop.trf.xlu0
      %v757 = vpop.trf.xlu0
      %v758 = vpop.trf.xlu0
      %v759 = vpop.trf.xlu0
      %v760 = vpop.trf.xlu0
      %v761 = vpop.trf.xlu0
      %v762 = vpop.trf.xlu0
      %v763 = vpop.trf.xlu0
      %v764 = vpop.trf.xlu0
      %v765 = vpop.trf.xlu0
      %v766 = vpop.trf.xlu0
      %v767 = vpop.trf.xlu0
      %v768 = vpop.trf.xlu0
      %v769 = vmul.f32 %v657, 0.7259314
      %v770 = vmul.f32 %v658, 0.7259314
      %v771 = vsub.f32 %v189, %v769
      %v772 = vsub.f32 %v191, %v770
      %v773 = vand.u32 2147483647, %v771
      %v774 = vand.u32 2147483647, %v772
      %v775 = vsel %vm252, %v773, 0.0
      %v776 = vsel %vm252, %v774, 0.0
      %v777 = vadd.f32 %v775, %v776
      %778 = vadd.xlane.f32.xlu0 %v777
      %v779 = vpop.xlane.xlu0 %778
      %v780 = vrot.slane %v779, 4
      %v781 = vadd.f32 %v779, %v780
      %v782 = vrot.slane %v781, 2
      %v783 = vadd.f32 %v781, %v782
      %v784 = vrot.slane %v783, 1
      %v785 = vadd.f32 %v783, %v784
      %s786 = vtos %v785
      %v787 = vmul.f32 %v689, 0.7259314
      %v788 = vmul.f32 %v690, 0.7259314
      %v789 = vmul.f32 %v721, 0.7259314
      %v790 = vmul.f32 %v722, 0.7259314
      %v791 = vmul.f32 %v753, 0.7259314
      %v792 = vmul.f32 %v754, 0.7259314
      %v793 = vmul.f32 %v657, 0.27406862
      %v794 = vmul.f32 %v658, 0.27406862
      %v795 = vmul.f32 %v689, 0.27406862
      %v796 = vmul.f32 %v690, 0.27406862
      %v797 = vmul.f32 %v721, 0.27406862
      %v798 = vmul.f32 %v722, 0.27406862
      %v799 = vadd.f32 %v787, %v793
      %v800 = vadd.f32 %v788, %v794
      %v801 = vadd.f32 %v789, %v795
      %v802 = vadd.f32 %v790, %v796
      %v803 = vadd.f32 %v791, %v797
      %v804 = vadd.f32 %v792, %v798
      %v805 = vsub.f32 %v193, %v799
      %v806 = vsub.f32 %v195, %v800
      %v807 = vsub.f32 %v197, %v801
      %v808 = vsub.f32 %v199, %v802
      %v809 = vsub.f32 %v201, %v803
      %v810 = vsub.f32 %v203, %v804
      %v811 = vand.u32 2147483647, %v805
      %v812 = vand.u32 2147483647, %v806
      %v813 = vand.u32 2147483647, %v807
      %v814 = vand.u32 2147483647, %v808
      %v815 = vand.u32 2147483647, %v809
      %v816 = vand.u32 2147483647, %v810
      %v817 = vsel %vm252, %v811, 0.0
      %v818 = vsel %vm252, %v812, 0.0
      %v819 = vadd.f32 %v817, %v818
      %v820 = vsel %vm252, %v813, 0.0
      %v821 = vadd.f32 %v819, %v820
      %v822 = vsel %vm252, %v814, 0.0
      %v823 = vadd.f32 %v821, %v822
      %v824 = vsel %vm252, %v815, 0.0
      %v825 = vadd.f32 %v823, %v824
      %v826 = vsel %vm252, %v816, 0.0
      %v827 = vadd.f32 %v825, %v826
      %828 = vadd.xlane.f32.xlu0 %v827
      %v829 = vpop.xlane.xlu0 %828
      %v830 = vrot.slane %v829, 4
      %v831 = vadd.f32 %v829, %v830
      %v832 = vrot.slane %v831, 2
      %v833 = vadd.f32 %v831, %v832
      %v834 = vrot.slane %v833, 1
      %v835 = vadd.f32 %v833, %v834
      %s836 = vtos %v835
      %s837 = sadd.f32 %s786, %s836
      %v838 = vmul.f32 %v753, 0.27406862
      %v839 = vmul.f32 %v754, 0.27406862
      %v840 = vadd.f32 %v769, %v795
      %v841 = vadd.f32 %v770, %v796
      %v842 = vadd.f32 %v787, %v797
      %v843 = vadd.f32 %v788, %v798
      %v844 = vadd.f32 %v789, %v838
      %v845 = vadd.f32 %v790, %v839
      %v846 = vsub.f32 %v205, %v840
      %v847 = vsub.f32 %v207, %v841
      %v848 = vsub.f32 %v209, %v842
      %v849 = vsub.f32 %v211, %v843
      %v850 = vsub.f32 %v213, %v844
      %v851 = vsub.f32 %v215, %v845
      %v852 = vand.u32 2147483647, %v846
      %v853 = vand.u32 2147483647, %v847
      %v854 = vand.u32 2147483647, %v848
      %v855 = vand.u32 2147483647, %v849
      %v856 = vand.u32 2147483647, %v850
      %v857 = vand.u32 2147483647, %v851
      %v858 = vsel %vm252, %v852, 0.0
      %v859 = vsel %vm252, %v853, 0.0
      %v860 = vadd.f32 %v858, %v859
      %v861 = vsel %vm252, %v854, 0.0
      %v862 = vadd.f32 %v860, %v861
      %v863 = vsel %vm252, %v855, 0.0
      %v864 = vadd.f32 %v862, %v863
      %v865 = vsel %vm252, %v856, 0.0
      %v866 = vadd.f32 %v864, %v865
      %v867 = vsel %vm252, %v857, 0.0
      %v868 = vadd.f32 %v866, %v867
      %869 = vadd.xlane.f32.xlu0 %v868
      %v870 = vpop.xlane.xlu0 %869
      %v871 = vrot.slane %v870, 4
      %v872 = vadd.f32 %v870, %v871
      %v873 = vrot.slane %v872, 2
      %v874 = vadd.f32 %v872, %v873
      %v875 = vrot.slane %v874, 1
      %v876 = vadd.f32 %v874, %v875
      %s877 = vtos %v876
      %s878 = sadd.f32 %s837, %s877
      %v879 = vsub.f32 %v217, %v791
      %v880 = vsub.f32 %v219, %v792
      %v881 = vand.u32 2147483647, %v879
      %v882 = vand.u32 2147483647, %v880
      %v883 = vsel %vm252, %v881, 0.0
      %v884 = vsel %vm252, %v882, 0.0
      %v885 = vadd.f32 %v883, %v884
      %886 = vadd.xlane.f32.xlu0 %v885
      %v887 = vpop.xlane.xlu0 %886
      %v888 = vrot.slane %v887, 4
      %v889 = vadd.f32 %v887, %v888
      %v890 = vrot.slane %v889, 2
      %v891 = vadd.f32 %v889, %v890
      %v892 = vrot.slane %v891, 1
      %v893 = vadd.f32 %v891, %v892
      %s894 = vtos %v893
      %s895 = sadd.f32 %s878, %s894
      %s896 = smul.f32 %s895, 0.00048828125
      %v897 = vstv %s896
      %v898 = vadd.f32 %v897, 0.0
      %899 = vst [vmem:[%s171] sm:$0xff] %v898
      %p900 = scmp.lt.s32.totalorder %s14, 1
      %s901 = scalar_select %p900, %s14, 1
      %s902 = smul.addr %s901, 8
      %s903 = scalar_lea.vmem %s3, %s902
      // Predicated region
      $region33: #{segmentation_loss.3} parent=31 // pred_check
        %p904 = pneg %p100
      $region34: #{segmentation_loss.3} parent=31 // pred_check_branch
        %906 = sbr.rel (%p904) target = $region36
      $region35: #{segmentation_loss.3} parent=31 // pred_region
        _
      $region36: #{segmentation_loss.3} parent=31 // pred_fallthru
        _
    $region32: #{segmentation_loss.3} parent=5 // pred_fallthru
      _
    %p907 = scmp.le.s32.totalorder 2, %s9
    // Predicated region
    $region37: #{segmentation_loss.3} parent=5 // pred_check
      %p908 = pneg %p907
    $region38: #{segmentation_loss.3} parent=5 // pred_check_branch
      %910 = sbr.rel (%p908) target = $region40
    $region39: #{segmentation_loss.3} parent=5 // pred_region
      %s911 = ssub.s32 %s9, 2
      // Predicated region
      $region41: #{segmentation_loss.3} parent=39 // pred_check
        %p912 = pneg %p106
      $region42: #{segmentation_loss.3} parent=39 // pred_check_branch
        %914 = sbr.rel (%p912) target = $region44
      $region43: #{segmentation_loss.3} parent=39 // pred_region
        %p915 = scmp.lt.s32.totalorder %s15, 1
        %s916 = scalar_select %p915, %s15, 1
        %s917 = smul.addr %s916, 8
        %s918 = scalar_lea.vmem %s3, %s917
      $region44: #{segmentation_loss.3} parent=39 // pred_fallthru
        _
    $region40: #{segmentation_loss.3} parent=5 // pred_fallthru
      _
  $region6: #{segmentation_loss.3} parent=0 // loop_footer
    %s13 = sadd.s32 1, %s9
  $region7: #{segmentation_loss.3} parent=0 // loop_footer_branch
    %8 = sbr.rel target = $region3
  $region8: #{segmentation_loss.3} parent=0 // loop_exit
    _

</llo_original>
